<compile_context>
chip_gen: v6e
topology: v6e:2x2x1
jax: 0.10.0
libtpu: 0.0.40
codegen_flags: <defaults>
</compile_context>

<pallas_src>
import functools

import jax
import jax.numpy as jnp
from jax import lax
from jax.experimental import pallas as pl
from jax.experimental.pallas import tpu as pltpu


# ----------------------------------------------------------------------------
# Pallas kernel: Nb images per grid step, packed into one (C, Nb*HW) lane slab.
# ----------------------------------------------------------------------------
def _repconv_kernel(x_ref, w01_ref, k1t_ref, k2m_ref, masks_ref, cbias_ref,
                    alpha_ref, o_ref, *, Nb, H, W, M1p, with_idt,
                    compute_dtype):
    HW = H * W
    L = Nb * HW

    # Pack Nb images into the lane axis.  Lane offsets are multiples of
    # HW (>=128) -> tile-aligned lane copies, no sublane shuffles.
    if Nb == 1:
        xp = x_ref[0]                                        # (Cin, HW) f32
    else:
        xp = jnp.concatenate([x_ref[j] for j in range(Nb)], axis=1)
    xc = xp.astype(compute_dtype)

    # Fused 1x1s: rows [0, M1p) -> branch1 head (k0, zero-padded rows),
    # rows [M1p, :) -> branch2 (w2).  Biases are folded into cbias.
    z01 = jnp.dot(w01_ref[...], xc, preferred_element_type=jnp.float32)
    z = z01[:M1p, :]                                         # (M1p, L) f32
    y_b2 = z01[M1p:, :]                                      # (Cout, L) f32
    zc = z.astype(compute_dtype)

    # 3x3 conv over the b0-bordered padded map as 9 accumulating tap matmuls:
    #   y1_data = sum_t k1_t @ (mask_t * shift_t(z)).
    # The b0-border / b1 contribution is a per-channel constant (in cbias), so
    # invalid taps just contribute 0.  masks also zero roll wrap-around and
    # cross-image bleed inside the packed lane slab.
    masks = masks_ref[...]                                   # (8, L)
    y1 = jnp.dot(k1t_ref[4], zc, preferred_element_type=jnp.float32)  # centre
    slot = 0
    for t in range(9):
        dh = t // 3 - 1
        dw = t % 3 - 1
        if dh == 0 and dw == 0:
            continue
        s = dh * W + dw                                      # flat lane shift
        shifted = pltpu.roll(zc, shift=(-s) % L, axis=1)     # shifted[f]=zc[f+s]
        y1 = y1 + jnp.dot(k1t_ref[t], shifted * masks[slot],
                          preferred_element_type=jnp.float32)
        slot += 1

    # Branch1 tail 1x1 + branch2 + folded per-channel bias.
    y = jnp.dot(k2m_ref[...], y1.astype(compute_dtype),
                preferred_element_type=jnp.float32)
    y = y + y_b2 + cbias_ref[...]
    if with_idt:
        y = y + xp

    # PReLU epilogue in f32 (per-channel alpha); cast only at the store.
    alpha = alpha_ref[...]                                   # (Cout, 1) f32
    yact = jnp.where(y >= 0.0, y, alpha * y)

    # Unpack the lane slab back to per-image slabs (lane-dense stores).
    for j in range(Nb):
        o_ref[j] = yact[:, j * HW:(j + 1) * HW].astype(o_ref.dtype)


def _pick_images_per_step(N, HW, target_lanes=2048):
    """Largest Nb dividing N with Nb*HW <= ~2048 lanes, keeping grid >= 2."""
    best = 1
    for nb in range(1, N + 1):
        if N % nb:
            continue
        if N >= 2 and (N // nb) < 2:
            continue                     # keep >=2 parallel steps (v7x 2 TCs)
        if nb * HW <= max(target_lanes, HW):
            best = nb
    return best


# ----------------------------------------------------------------------------
# Wrapper: weight re-layout (tiny, done once) + pallas_call.  No transposes.
# ----------------------------------------------------------------------------
def rep_conv_block(x_nchw, params, *, with_idt=False,
                   compute_dtype=jnp.float32, out_dtype=None,
                   images_per_step=None):
    N, Cin, H, W = x_nchw.shape
    HW = H * W
    k0, b0, k1, b1, k2, b2, w2, bb2, alpha = (
        params['k0'], params['b0'], params['k1'], params['b1'],
        params['k2'], params['b2'], params['w2'], params['bb2'],
        params['alpha'])
    M1 = k0.shape[0]
    M2 = k1.shape[0]
    Cout = k2.shape[0]
    if with_idt:
        assert Cin == Cout, "with_idt requires inp_planes == out_planes"

    cd = jnp.dtype(compute_dtype)
    od = jnp.dtype(out_dtype) if out_dtype is not None else jnp.dtype(jnp.float32)

    if images_per_step is None:
        Nb = _pick_images_per_step(N, HW)
    else:
        Nb = int(images_per_step)
        assert N % Nb == 0
    G = N // Nb
    L = Nb * HW
    M1p = ((M1 + 7) // 8) * 8            # sublane-align the branch1 head slab

    # NCHW is already channel-major; flatten spatial into the lane dim (free).
    # TODO(synk): for a bandwidth-bound deployment (v5e) feed x as bf16 to
    # halve activation DMA; kept f32 here for the strict correctness check.
    x = x_nchw.reshape(N, Cin, HW).astype(jnp.float32)

    # Fused head weight: [k0 zero-padded to M1p rows ; w2]  (no biases here).
    k0m = jnp.zeros((M1p, Cin), jnp.float32).at[:M1, :].set(k0[:, :, 0, 0])
    w2m = w2[:, :, 0, 0]
    w01 = jnp.concatenate([k0m, w2m], axis=0).astype(cd)     # (M1p+Cout, Cin)

    # 3x3 taps: (9, M2, M1p), tap t = di*3 + dj; extra columns are zero.
    k1t = jnp.transpose(k1, (2, 3, 0, 1)).reshape(9, M2, M1)
    k1t = jnp.zeros((9, M2, M1p), jnp.float32).at[:, :, :M1].set(k1t).astype(cd)

    k2m = k2[:, :, 0, 0]                                     # (Cout, M2) f32
    k2m_cd = k2m.astype(cd)

    # Fold ALL biases into one per-output-channel constant:
    #   y1 = sum_t k1_t @ (mask_t * shift_t(k0 x)) + (sum_t k1_t) b0 + b1
    #   y  = k2 y1 + b2 + (w2 x + bb2)
    bias_mid = k1.sum(axis=(2, 3)) @ b0 + b1                 # (M2,)
    cbias = (k2m @ bias_mid + b2 + bb2).reshape(Cout, 1).astype(jnp.float32)

    # 8 border-validity masks (non-centre taps), tiled across the lane slab.
    p_idx = jnp.arange(HW)
    h_idx = p_idx // W
    w_idx = p_idx % W
    rows = []
    for t in range(9):
        dh, dw = t // 3 - 1, t % 3 - 1
        if dh == 0 and dw == 0:
            continue
        rows.append((h_idx + dh >= 0) & (h_idx + dh < H) &
                    (w_idx + dw >= 0) & (w_idx + dw < W))
    masks = jnp.stack(rows, axis=0).astype(cd)               # (8, HW)
    if Nb > 1:
        masks = jnp.tile(masks, (1, Nb))                     # (8, L)

    alpha_c = alpha.reshape(Cout, 1).astype(jnp.float32)

    kernel = functools.partial(_repconv_kernel, Nb=Nb, H=H, W=W, M1p=M1p,
                               with_idt=with_idt, compute_dtype=cd)

    def _resident(a):
        nd = a.ndim
        return pl.BlockSpec(a.shape, lambda g, _nd=nd: (0,) * _nd)

    out = pl.pallas_call(
        kernel,
        out_shape=jax.ShapeDtypeStruct((N, Cout, HW), od),
        grid_spec=pltpu.PrefetchScalarGridSpec(
            num_scalar_prefetch=0,
            grid=(G,),
            in_specs=[
                pl.BlockSpec((Nb, Cin, HW), lambda g: (g, 0, 0)),
                _resident(w01),
                _resident(k1t),
                _resident(k2m_cd),
                _resident(masks),
                _resident(cbias),
                _resident(alpha_c),
            ],
            out_specs=pl.BlockSpec((Nb, Cout, HW), lambda g: (g, 0, 0)),
        ),
        compiler_params=pltpu.CompilerParams(
            dimension_semantics=("parallel",),   # batch steps shard over TCs
            # 48 MiB: safely under v7x's 64 MiB/TC; tiles here are tiny.  On
            # v5e/v6e (128 MiB) this can be raised toward ~100 MiB together
            # with a larger lane slab (target_lanes) for big batches.
            vmem_limit_bytes=48 * 1024 * 1024),
    )(x, w01, k1t, k2m_cd, masks, cbias, alpha_c)

    return out.reshape(N, Cout, H, W)


# ----------------------------------------------------------------------------
# Pure-JAX reference (literal transcription of the PyTorch training forward).
# ----------------------------------------------------------------------------
def _ref_forward(x, params, *, with_idt=False):
    dn = ('NCHW', 'OIHW', 'NCHW')

    def conv(inp, w, b):
        y = lax.conv_general_dilated(inp, w, (1, 1), 'VALID',
                                     dimension_numbers=dn)
        return y + b[None, :, None, None]

    p = params
    y0 = conv(x, p['k0'], p['b0'])
    y0p = jnp.pad(y0, ((0, 0), (0, 0), (1, 1), (1, 1)))
    b0v = p['b0'][None, :, None, None]
    y0p = y0p.at[:, :, 0:1, :].set(b0v)
    y0p = y0p.at[:, :, -1:, :].set(b0v)
    y0p = y0p.at[:, :, :, 0:1].set(b0v)
    y0p = y0p.at[:, :, :, -1:].set(b0v)
    y1 = conv(y0p, p['k1'], p['b1'])
    y2 = conv(y1, p['k2'], p['b2'])
    yb2 = conv(x, p['w2'], p['bb2'])
    y = y2 + yb2
    if with_idt:
        y = y + x
    a = p['alpha'][None, :, None, None]
    return jnp.where(y >= 0.0, y, a * y)


# ----------------------------------------------------------------------------
def _init_params(key, inp_planes, out_planes, depth_multiplier):
    m1 = int(inp_planes * depth_multiplier)
    m2 = int(inp_planes * depth_multiplier)

    def conv_init(key, o, i, kh, kw):
        kw_, kb_ = jax.random.split(key)
        fan_in = i * kh * kw
        bound = 1.0 / jnp.sqrt(fan_in)
        w = jax.random.uniform(kw_, (o, i, kh, kw), jnp.float32, -bound, bound)
        b = jax.random.uniform(kb_, (o,), jnp.float32, -bound, bound)
        return w, b

    ks = jax.random.split(key, 4)
    k0, b0 = conv_init(ks[0], m1, inp_planes, 1, 1)
    k1, b1 = conv_init(ks[1], m2, m1, 3, 3)
    k2, b2 = conv_init(ks[2], out_planes, m2, 1, 1)
    w2, bb2 = conv_init(ks[3], out_planes, inp_planes, 1, 1)
    alpha = jnp.full((out_planes,), 0.25, jnp.float32)  # nn.PReLU default
    return dict(k0=k0, b0=b0, k1=k1, b1=b1, k2=k2, b2=b2,
                w2=w2, bb2=bb2, alpha=alpha)


if __name__ == "__main__":
    # Small, module-consistent shapes: batch=2, channels=4, spatial=16x16.
    N, C, H, W = 2, 4, 16, 16
    inp_planes = out_planes = C
    depth_multiplier = 1

    key = jax.random.PRNGKey(0)
    kx, kx2, kp = jax.random.split(key, 3)
    x = jax.random.normal(kx, (N, C, H, W), jnp.float32)      # NCHW (PyTorch)
    params = _init_params(kp, inp_planes, out_planes, depth_multiplier)

    # TODO(synk): only act_type='prelu' (module default) is implemented;
    # rrelu's training-time randomness has no clean deterministic equivalent.
    y_ref = _ref_forward(x, params, with_idt=False)

    # 1) f32 path, batch=2 (Nb=1 per step, grid=(2,) -> 2 parallel steps).
    y = jax.block_until_ready(rep_conv_block(x, params))
    assert y.shape == (N, out_planes, H, W)
    assert jnp.allclose(y, y_ref, atol=1e-4, rtol=1e-4), \
        float(jnp.max(jnp.abs(y - y_ref)))

    # 2) f32 path with batch packing: N=8 -> Nb=4 images per step, grid=(2,).
    N2 = 8
    x2 = jax.random.normal(kx2, (N2, C, H, W), jnp.float32)
    y2_ref = _ref_forward(x2, params, with_idt=False)
    y2 = jax.block_until_ready(rep_conv_block(x2, params))
    assert y2.shape == (N2, out_planes, H, W)
    assert jnp.allclose(y2, y2_ref, atol=1e-4, rtol=1e-4), \
        float(jnp.max(jnp.abs(y2 - y2_ref)))

    # 3) bf16 MXU operands / f32 accumulation, bf16 output (loose tolerance
    #    because operands and the stored result are rounded to bf16).
    y3 = jax.block_until_ready(
        rep_conv_block(x2, params, compute_dtype=jnp.bfloat16,
                       out_dtype=jnp.bfloat16))
    err3 = float(jnp.max(jnp.abs(y3.astype(jnp.float32) - y2_ref)))
    assert err3 < 0.15, err3

    print("KERNEL_OK")
</pallas_src>

<mosaic_0001>
module attributes {stable_mosaic.version = 11 : i64} {
  func.func @_repconv_kernel(%arg0: i32, %arg1: memref<1x4x256xf32, #tpu.memory_space<vmem>>, %arg2: memref<12x4xf32, #tpu.memory_space<vmem>>, %arg3: memref<9x4x8xf32, #tpu.memory_space<vmem>>, %arg4: memref<4x4xf32, #tpu.memory_space<vmem>>, %arg5: memref<8x256xf32, #tpu.memory_space<vmem>>, %arg6: memref<4x1xf32, #tpu.memory_space<vmem>>, %arg7: memref<4x1xf32, #tpu.memory_space<vmem>>, %arg8: memref<1x4x256xf32, #tpu.memory_space<vmem>>) attributes {dimension_semantics = [#tpu.dimension_semantics<parallel>], iteration_bounds = array<i64: 2>, scalar_prefetch = 0 : i64, scratch_operands = 0 : i64, tpu.core_type = #tpu.core_type<tc>, window_params = [{transform_indices = @transform_0, window_bounds = array<i64: 1, 4, 256>}, {pipeline_mode = #tpu.pipeline_mode<synchronous>, transform_indices = @transform_1, window_bounds = array<i64: 12, 4>}, {pipeline_mode = #tpu.pipeline_mode<synchronous>, transform_indices = @transform_2, window_bounds = array<i64: 9, 4, 8>}, {pipeline_mode = #tpu.pipeline_mode<synchronous>, transform_indices = @transform_3, window_bounds = array<i64: 4, 4>}, {pipeline_mode = #tpu.pipeline_mode<synchronous>, transform_indices = @transform_4, window_bounds = array<i64: 8, 256>}, {pipeline_mode = #tpu.pipeline_mode<synchronous>, transform_indices = @transform_5, window_bounds = array<i64: 4, 1>}, {pipeline_mode = #tpu.pipeline_mode<synchronous>, transform_indices = @transform_6, window_bounds = array<i64: 4, 1>}, {transform_indices = @transform_7, window_bounds = array<i64: 1, 4, 256>}]} {
    %c0 = arith.constant 0 : index
    %c0_0 = arith.constant 0 : index
    %c0_1 = arith.constant 0 : index
    %0 = vector.load %arg1[%c0, %c0_0, %c0_1] : memref<1x4x256xf32, #tpu.memory_space<vmem>>, vector<1x4x256xf32>
    %1 = vector.shape_cast %0 : vector<1x4x256xf32> to vector<4x256xf32>
    %c0_2 = arith.constant 0 : index
    %c0_3 = arith.constant 0 : index
    %2 = vector.load %arg2[%c0_2, %c0_3] : memref<12x4xf32, #tpu.memory_space<vmem>>, vector<12x4xf32>
    %cst = arith.constant dense<0.000000e+00> : vector<12x256xf32>
    %3 = tpu.matmul %2, %1, %cst {dimension_numbers = #tpu.dot_dimension_numbers<[1], [0], [0], [1], [0, 0, 1, 1], [], []>} : vector<12x4xf32>, vector<4x256xf32>, vector<12x256xf32> -> vector<12x256xf32>
    %4 = vector.extract_strided_slice %3 {offsets = [0, 0], sizes = [8, 256], strides = [1, 1]} : vector<12x256xf32> to vector<8x256xf32>
    %5 = vector.extract_strided_slice %3 {offsets = [8, 0], sizes = [4, 256], strides = [1, 1]} : vector<12x256xf32> to vector<4x256xf32>
    %c0_4 = arith.constant 0 : index
    %c0_5 = arith.constant 0 : index
    %6 = vector.load %arg5[%c0_4, %c0_5] : memref<8x256xf32, #tpu.memory_space<vmem>>, vector<8x256xf32>
    %c4 = arith.constant 4 : index
    %c0_6 = arith.constant 0 : index
    %c0_7 = arith.constant 0 : index
    %7 = vector.load %arg3[%c4, %c0_6, %c0_7] : memref<9x4x8xf32, #tpu.memory_space<vmem>>, vector<1x4x8xf32>
    %8 = vector.shape_cast %7 : vector<1x4x8xf32> to vector<4x8xf32>
    %cst_8 = arith.constant dense<0.000000e+00> : vector<4x256xf32>
    %9 = tpu.matmul %8, %4, %cst_8 {dimension_numbers = #tpu.dot_dimension_numbers<[1], [0], [0], [1], [0, 0, 1, 1], [], []>} : vector<4x8xf32>, vector<8x256xf32>, vector<4x256xf32> -> vector<4x256xf32>
    %c17_i32 = arith.constant 17 : i32
    %10 = tpu.dynamic_rotate %4 by %c17_i32 dim 1 : vector<8x256xf32>, i32 -> vector<8x256xf32>
    %c0_9 = arith.constant 0 : index
    %c0_10 = arith.constant 0 : index
    %c0_11 = arith.constant 0 : index
    %11 = vector.load %arg3[%c0_9, %c0_10, %c0_11] : memref<9x4x8xf32, #tpu.memory_space<vmem>>, vector<1x4x8xf32>
    %12 = vector.shape_cast %11 : vector<1x4x8xf32> to vector<4x8xf32>
    %13 = vector.extract_strided_slice %6 {offsets = [0, 0], sizes = [1, 256], strides = [1, 1]} : vector<8x256xf32> to vector<1x256xf32>
    %14 = vector.shape_cast %13 : vector<1x256xf32> to vector<256xf32>
    %15 = vector.shape_cast %14 : vector<256xf32> to vector<1x256xf32>
    %16 = vector.broadcast %15 : vector<1x256xf32> to vector<8x256xf32>
    %17 = arith.mulf %10, %16 : vector<8x256xf32>
    %cst_12 = arith.constant dense<0.000000e+00> : vector<4x256xf32>
    %18 = tpu.matmul %12, %17, %cst_12 {dimension_numbers = #tpu.dot_dimension_numbers<[1], [0], [0], [1], [0, 0, 1, 1], [], []>} : vector<4x8xf32>, vector<8x256xf32>, vector<4x256xf32> -> vector<4x256xf32>
    %19 = arith.addf %9, %18 : vector<4x256xf32>
    %c16_i32 = arith.constant 16 : i32
    %20 = tpu.dynamic_rotate %4 by %c16_i32 dim 1 : vector<8x256xf32>, i32 -> vector<8x256xf32>
    %c1 = arith.constant 1 : index
    %c0_13 = arith.constant 0 : index
    %c0_14 = arith.constant 0 : index
    %21 = vector.load %arg3[%c1, %c0_13, %c0_14] : memref<9x4x8xf32, #tpu.memory_space<vmem>>, vector<1x4x8xf32>
    %22 = vector.shape_cast %21 : vector<1x4x8xf32> to vector<4x8xf32>
    %23 = vector.extract_strided_slice %6 {offsets = [1, 0], sizes = [1, 256], strides = [1, 1]} : vector<8x256xf32> to vector<1x256xf32>
    %24 = vector.shape_cast %23 : vector<1x256xf32> to vector<256xf32>
    %25 = vector.shape_cast %24 : vector<256xf32> to vector<1x256xf32>
    %26 = vector.broadcast %25 : vector<1x256xf32> to vector<8x256xf32>
    %27 = arith.mulf %20, %26 : vector<8x256xf32>
    %cst_15 = arith.constant dense<0.000000e+00> : vector<4x256xf32>
    %28 = tpu.matmul %22, %27, %cst_15 {dimension_numbers = #tpu.dot_dimension_numbers<[1], [0], [0], [1], [0, 0, 1, 1], [], []>} : vector<4x8xf32>, vector<8x256xf32>, vector<4x256xf32> -> vector<4x256xf32>
    %29 = arith.addf %19, %28 : vector<4x256xf32>
    %c15_i32 = arith.constant 15 : i32
    %30 = tpu.dynamic_rotate %4 by %c15_i32 dim 1 : vector<8x256xf32>, i32 -> vector<8x256xf32>
    %c2 = arith.constant 2 : index
    %c0_16 = arith.constant 0 : index
    %c0_17 = arith.constant 0 : index
    %31 = vector.load %arg3[%c2, %c0_16, %c0_17] : memref<9x4x8xf32, #tpu.memory_space<vmem>>, vector<1x4x8xf32>
    %32 = vector.shape_cast %31 : vector<1x4x8xf32> to vector<4x8xf32>
    %33 = vector.extract_strided_slice %6 {offsets = [2, 0], sizes = [1, 256], strides = [1, 1]} : vector<8x256xf32> to vector<1x256xf32>
    %34 = vector.shape_cast %33 : vector<1x256xf32> to vector<256xf32>
    %35 = vector.shape_cast %34 : vector<256xf32> to vector<1x256xf32>
    %36 = vector.broadcast %35 : vector<1x256xf32> to vector<8x256xf32>
    %37 = arith.mulf %30, %36 : vector<8x256xf32>
    %cst_18 = arith.constant dense<0.000000e+00> : vector<4x256xf32>
    %38 = tpu.matmul %32, %37, %cst_18 {dimension_numbers = #tpu.dot_dimension_numbers<[1], [0], [0], [1], [0, 0, 1, 1], [], []>} : vector<4x8xf32>, vector<8x256xf32>, vector<4x256xf32> -> vector<4x256xf32>
    %39 = arith.addf %29, %38 : vector<4x256xf32>
    %c1_i32 = arith.constant 1 : i32
    %40 = tpu.dynamic_rotate %4 by %c1_i32 dim 1 : vector<8x256xf32>, i32 -> vector<8x256xf32>
    %c3 = arith.constant 3 : index
    %c0_19 = arith.constant 0 : index
    %c0_20 = arith.constant 0 : index
    %41 = vector.load %arg3[%c3, %c0_19, %c0_20] : memref<9x4x8xf32, #tpu.memory_space<vmem>>, vector<1x4x8xf32>
    %42 = vector.shape_cast %41 : vector<1x4x8xf32> to vector<4x8xf32>
    %43 = vector.extract_strided_slice %6 {offsets = [3, 0], sizes = [1, 256], strides = [1, 1]} : vector<8x256xf32> to vector<1x256xf32>
    %44 = vector.shape_cast %43 : vector<1x256xf32> to vector<256xf32>
    %45 = vector.shape_cast %44 : vector<256xf32> to vector<1x256xf32>
    %46 = vector.broadcast %45 : vector<1x256xf32> to vector<8x256xf32>
    %47 = arith.mulf %40, %46 : vector<8x256xf32>
    %cst_21 = arith.constant dense<0.000000e+00> : vector<4x256xf32>
    %48 = tpu.matmul %42, %47, %cst_21 {dimension_numbers = #tpu.dot_dimension_numbers<[1], [0], [0], [1], [0, 0, 1, 1], [], []>} : vector<4x8xf32>, vector<8x256xf32>, vector<4x256xf32> -> vector<4x256xf32>
    %49 = arith.addf %39, %48 : vector<4x256xf32>
    %c255_i32 = arith.constant 255 : i32
    %50 = tpu.dynamic_rotate %4 by %c255_i32 dim 1 : vector<8x256xf32>, i32 -> vector<8x256xf32>
    %c5 = arith.constant 5 : index
    %c0_22 = arith.constant 0 : index
    %c0_23 = arith.constant 0 : index
    %51 = vector.load %arg3[%c5, %c0_22, %c0_23] : memref<9x4x8xf32, #tpu.memory_space<vmem>>, vector<1x4x8xf32>
    %52 = vector.shape_cast %51 : vector<1x4x8xf32> to vector<4x8xf32>
    %53 = vector.extract_strided_slice %6 {offsets = [4, 0], sizes = [1, 256], strides = [1, 1]} : vector<8x256xf32> to vector<1x256xf32>
    %54 = vector.shape_cast %53 : vector<1x256xf32> to vector<256xf32>
    %55 = vector.shape_cast %54 : vector<256xf32> to vector<1x256xf32>
    %56 = vector.broadcast %55 : vector<1x256xf32> to vector<8x256xf32>
    %57 = arith.mulf %50, %56 : vector<8x256xf32>
    %cst_24 = arith.constant dense<0.000000e+00> : vector<4x256xf32>
    %58 = tpu.matmul %52, %57, %cst_24 {dimension_numbers = #tpu.dot_dimension_numbers<[1], [0], [0], [1], [0, 0, 1, 1], [], []>} : vector<4x8xf32>, vector<8x256xf32>, vector<4x256xf32> -> vector<4x256xf32>
    %59 = arith.addf %49, %58 : vector<4x256xf32>
    %c241_i32 = arith.constant 241 : i32
    %60 = tpu.dynamic_rotate %4 by %c241_i32 dim 1 : vector<8x256xf32>, i32 -> vector<8x256xf32>
    %c6 = arith.constant 6 : index
    %c0_25 = arith.constant 0 : index
    %c0_26 = arith.constant 0 : index
    %61 = vector.load %arg3[%c6, %c0_25, %c0_26] : memref<9x4x8xf32, #tpu.memory_space<vmem>>, vector<1x4x8xf32>
    %62 = vector.shape_cast %61 : vector<1x4x8xf32> to vector<4x8xf32>
    %63 = vector.extract_strided_slice %6 {offsets = [5, 0], sizes = [1, 256], strides = [1, 1]} : vector<8x256xf32> to vector<1x256xf32>
    %64 = vector.shape_cast %63 : vector<1x256xf32> to vector<256xf32>
    %65 = vector.shape_cast %64 : vector<256xf32> to vector<1x256xf32>
    %66 = vector.broadcast %65 : vector<1x256xf32> to vector<8x256xf32>
    %67 = arith.mulf %60, %66 : vector<8x256xf32>
    %cst_27 = arith.constant dense<0.000000e+00> : vector<4x256xf32>
    %68 = tpu.matmul %62, %67, %cst_27 {dimension_numbers = #tpu.dot_dimension_numbers<[1], [0], [0], [1], [0, 0, 1, 1], [], []>} : vector<4x8xf32>, vector<8x256xf32>, vector<4x256xf32> -> vector<4x256xf32>
    %69 = arith.addf %59, %68 : vector<4x256xf32>
    %c240_i32 = arith.constant 240 : i32
    %70 = tpu.dynamic_rotate %4 by %c240_i32 dim 1 : vector<8x256xf32>, i32 -> vector<8x256xf32>
    %c7 = arith.constant 7 : index
    %c0_28 = arith.constant 0 : index
    %c0_29 = arith.constant 0 : index
    %71 = vector.load %arg3[%c7, %c0_28, %c0_29] : memref<9x4x8xf32, #tpu.memory_space<vmem>>, vector<1x4x8xf32>
    %72 = vector.shape_cast %71 : vector<1x4x8xf32> to vector<4x8xf32>
    %73 = vector.extract_strided_slice %6 {offsets = [6, 0], sizes = [1, 256], strides = [1, 1]} : vector<8x256xf32> to vector<1x256xf32>
    %74 = vector.shape_cast %73 : vector<1x256xf32> to vector<256xf32>
    %75 = vector.shape_cast %74 : vector<256xf32> to vector<1x256xf32>
    %76 = vector.broadcast %75 : vector<1x256xf32> to vector<8x256xf32>
    %77 = arith.mulf %70, %76 : vector<8x256xf32>
    %cst_30 = arith.constant dense<0.000000e+00> : vector<4x256xf32>
    %78 = tpu.matmul %72, %77, %cst_30 {dimension_numbers = #tpu.dot_dimension_numbers<[1], [0], [0], [1], [0, 0, 1, 1], [], []>} : vector<4x8xf32>, vector<8x256xf32>, vector<4x256xf32> -> vector<4x256xf32>
    %79 = arith.addf %69, %78 : vector<4x256xf32>
    %c239_i32 = arith.constant 239 : i32
    %80 = tpu.dynamic_rotate %4 by %c239_i32 dim 1 : vector<8x256xf32>, i32 -> vector<8x256xf32>
    %c8 = arith.constant 8 : index
    %c0_31 = arith.constant 0 : index
    %c0_32 = arith.constant 0 : index
    %81 = vector.load %arg3[%c8, %c0_31, %c0_32] : memref<9x4x8xf32, #tpu.memory_space<vmem>>, vector<1x4x8xf32>
    %82 = vector.shape_cast %81 : vector<1x4x8xf32> to vector<4x8xf32>
    %83 = vector.extract_strided_slice %6 {offsets = [7, 0], sizes = [1, 256], strides = [1, 1]} : vector<8x256xf32> to vector<1x256xf32>
    %84 = vector.shape_cast %83 : vector<1x256xf32> to vector<256xf32>
    %85 = vector.shape_cast %84 : vector<256xf32> to vector<1x256xf32>
    %86 = vector.broadcast %85 : vector<1x256xf32> to vector<8x256xf32>
    %87 = arith.mulf %80, %86 : vector<8x256xf32>
    %cst_33 = arith.constant dense<0.000000e+00> : vector<4x256xf32>
    %88 = tpu.matmul %82, %87, %cst_33 {dimension_numbers = #tpu.dot_dimension_numbers<[1], [0], [0], [1], [0, 0, 1, 1], [], []>} : vector<4x8xf32>, vector<8x256xf32>, vector<4x256xf32> -> vector<4x256xf32>
    %89 = arith.addf %79, %88 : vector<4x256xf32>
    %c0_34 = arith.constant 0 : index
    %c0_35 = arith.constant 0 : index
    %90 = vector.load %arg4[%c0_34, %c0_35] : memref<4x4xf32, #tpu.memory_space<vmem>>, vector<4x4xf32>
    %cst_36 = arith.constant dense<0.000000e+00> : vector<4x256xf32>
    %91 = tpu.matmul %90, %89, %cst_36 {dimension_numbers = #tpu.dot_dimension_numbers<[1], [0], [0], [1], [0, 0, 1, 1], [], []>} : vector<4x4xf32>, vector<4x256xf32>, vector<4x256xf32> -> vector<4x256xf32>
    %92 = arith.addf %91, %5 : vector<4x256xf32>
    %c0_37 = arith.constant 0 : index
    %c0_38 = arith.constant 0 : index
    %93 = vector.load %arg6[%c0_37, %c0_38] : memref<4x1xf32, #tpu.memory_space<vmem>>, vector<4x1xf32>
    %94 = vector.broadcast %93 : vector<4x1xf32> to vector<4x256xf32>
    %95 = arith.addf %92, %94 : vector<4x256xf32>
    %c0_39 = arith.constant 0 : index
    %c0_40 = arith.constant 0 : index
    %96 = vector.load %arg7[%c0_39, %c0_40] : memref<4x1xf32, #tpu.memory_space<vmem>>, vector<4x1xf32>
    %cst_41 = arith.constant 0.000000e+00 : f32
    %97 = vector.broadcast %cst_41 : f32 to vector<4x256xf32>
    %98 = arith.cmpf oge, %95, %97 : vector<4x256xf32>
    %99 = vector.broadcast %96 : vector<4x1xf32> to vector<4x256xf32>
    %100 = arith.mulf %99, %95 : vector<4x256xf32>
    %101 = arith.select %98, %95, %100 : vector<4x256xi1>, vector<4x256xf32>
    %c0_42 = arith.constant 0 : index
    %c0_43 = arith.constant 0 : index
    %c0_44 = arith.constant 0 : index
    %102 = vector.load %arg8[%c0_42, %c0_43, %c0_44] : memref<1x4x256xf32, #tpu.memory_space<vmem>>, vector<1x4x256xf32>
    %103 = vector.shape_cast %102 : vector<1x4x256xf32> to vector<4x256xf32>
    %104 = vector.shape_cast %101 : vector<4x256xf32> to vector<1x4x256xf32>
    tpu.vector_store %arg8[%c0_42, %c0_43, %c0_44], %104 {strides = array<i32>} : memref<1x4x256xf32, #tpu.memory_space<vmem>>, vector<1x4x256xf32>,
    return
  }
  func.func @transform_0(%arg0: i32) -> (i32, i32, i32) {
    %c0_i32 = arith.constant 0 : i32
    %c0_i32_0 = arith.constant 0 : i32
    %c0_i32_1 = arith.constant 0 : i32
    return %arg0, %c0_i32, %c0_i32_0 : i32, i32, i32
  }
  func.func @transform_1(%arg0: i32) -> (i32, i32) {
    %c0_i32 = arith.constant 0 : i32
    %c0_i32_0 = arith.constant 0 : i32
    %c0_i32_1 = arith.constant 0 : i32
    return %c0_i32, %c0_i32_0 : i32, i32
  }
  func.func @transform_2(%arg0: i32) -> (i32, i32, i32) {
    %c0_i32 = arith.constant 0 : i32
    %c0_i32_0 = arith.constant 0 : i32
    %c0_i32_1 = arith.constant 0 : i32
    %c0_i32_2 = arith.constant 0 : i32
    return %c0_i32, %c0_i32_0, %c0_i32_1 : i32, i32, i32
  }
  func.func @transform_3(%arg0: i32) -> (i32, i32) {
    %c0_i32 = arith.constant 0 : i32
    %c0_i32_0 = arith.constant 0 : i32
    %c0_i32_1 = arith.constant 0 : i32
    return %c0_i32, %c0_i32_0 : i32, i32
  }
  func.func @transform_4(%arg0: i32) -> (i32, i32) {
    %c0_i32 = arith.constant 0 : i32
    %c0_i32_0 = arith.constant 0 : i32
    %c0_i32_1 = arith.constant 0 : i32
    return %c0_i32, %c0_i32_0 : i32, i32
  }
  func.func @transform_5(%arg0: i32) -> (i32, i32) {
    %c0_i32 = arith.constant 0 : i32
    %c0_i32_0 = arith.constant 0 : i32
    %c0_i32_1 = arith.constant 0 : i32
    return %c0_i32, %c0_i32_0 : i32, i32
  }
  func.func @transform_6(%arg0: i32) -> (i32, i32) {
    %c0_i32 = arith.constant 0 : i32
    %c0_i32_0 = arith.constant 0 : i32
    %c0_i32_1 = arith.constant 0 : i32
    return %c0_i32, %c0_i32_0 : i32, i32
  }
  func.func @transform_7(%arg0: i32) -> (i32, i32, i32) {
    %c0_i32 = arith.constant 0 : i32
    %c0_i32_0 = arith.constant 0 : i32
    %c0_i32_1 = arith.constant 0 : i32
    return %arg0, %c0_i32, %c0_i32_0 : i32, i32, i32
  }
}

</mosaic_0001>

<llo_original>
// kernel: tpu_custom_call.1
$region0: #{tpu_custom_call.1}
  #allocation0 [shape = 'u32[]', space=smem, size = 0x4, offset = 0x4, fixed_abs, tag = 'smem constant byte address 0x4 - core index']
  #allocation1 [shape = 'u32[144,128]{1,0:T(1,128)}', space=vmem, size = 0x12000, scoped, tag = 'internal scratch']
  %s0 = inlined_call_operand.vmem [shape: f32[2,4,256], index: 0, kind: input, shape index: {}]
  %s1 = inlined_call_operand.vmem [shape: f32[12,4], index: 1, kind: input, shape index: {}]
  %s2 = inlined_call_operand.vmem [shape: f32[9,4,8], index: 2, kind: input, shape index: {}]
  %s3 = inlined_call_operand.vmem [shape: f32[4,4], index: 3, kind: input, shape index: {}]
  %s4 = inlined_call_operand.vmem [shape: f32[8,256], index: 4, kind: input, shape index: {}]
  %s5 = inlined_call_operand.vmem [shape: f32[4,1], index: 5, kind: input, shape index: {}]
  %s6 = inlined_call_operand.vmem [shape: f32[4,1], index: 6, kind: input, shape index: {}]
  %s7 = inlined_call_operand.hbm [shape: f32[2,4,256], index: 7, kind: output, shape index: {}]
  %s8 = sld [smem:[#allocation0]]
  $region61: #{tpu_custom_call.1} parent=0
    _
  %s10 = ssub.s32 1, %s8
  %s11 = scalar_select 0, %s10, %s8
  $region1: #{tpu_custom_call.1} parent=0
    #allocation2 [shape = 'u8[8192]{0}', space=vmem, size = 0x2000, scoped, tag = 'output window, operand 0']
    #allocation3 [shape = 's32[2]{0}', space=sflag, size = 0x8, scoped, tag = 'scoped memory for tpu_custom_call.1']
    %12 = vsyncpa [#allocation3], 0
    %s13 = scalar_lea.sflag [#allocation3], 1
    %14 = vsyncpa %s13, 0
    loop: start=0, step=1, limit=4
    $region2: #{tpu_custom_call.1} parent=1 // loop_pre_header
      _
    $region3: #{tpu_custom_call.1} parent=1 // loop_header
      %s16 = sphi 0, %s20
      %p17 = scmp.ge.s32.totalorder %s16, 4
      %s26 = sphi 0, %s28
      %s29 = sphi 0, %s26
      %s30 = sphi 0, %s29
      %s46 = sphi 0, %s30
      %s50 = sphi 0, %s50
      %s52 = sphi 0, %s50
      %s53 = sphi 0, %s52
      %s67 = sphi 0, %s53
      %s71 = sphi 0, %s71
      %s73 = sphi 0, %s71
      %s74 = sphi 0, %s73
      %s88 = sphi 0, %s74
      %s92 = sphi 0, %s92
      %s94 = sphi 0, %s92
      %s95 = sphi 0, %s94
      %s109 = sphi 0, %s95
      %s113 = sphi 0, %s113
      %s115 = sphi 0, %s113
      %s116 = sphi 0, %s115
      %s130 = sphi 0, %s116
      %s134 = sphi 0, %s134
      %s136 = sphi 0, %s134
      %s137 = sphi 0, %s136
      %s151 = sphi 0, %s137
      %s155 = sphi 0, %s155
      %s157 = sphi 0, %s155
      %s158 = sphi 0, %s157
      %s172 = sphi 0, %s158
      %s178 = sphi 0, %s180
      %s181 = sphi 0, %s178
      %s182 = sphi 0, %s181
      %s198 = sphi 0, %s182
    $region4: #{tpu_custom_call.1} parent=1 // loop_header_branch
      %19 = sbr.rel (%p17) target = $region8
    $region5: #{tpu_custom_call.1} parent=1 // loop_body
      %s21 = ssub.s32 %s16, 1
      %s22 = ssub.s32 %s16, 2
      %s23 = sadd.s32 %s16, 1
      %s24 = ssub.s32 %s16, %s23
      %p25 = scmp.eq.s32.totalorder %s24, 0
      %s27 = sadd.s32 %s26, 1
      %s28 = scalar_select %p25, %s26, %s27
      %p31 = pneg %p25
      %p32 = scmp.eq.s32.totalorder %s16, 1
      %p33 = por %p31, %p32
      %p34 = scmp.ne.s32.totalorder %s26, %s29
      %p35 = scmp.eq.s32.totalorder %s16, 0
      %p36 = por %p34, %p35
      %p37 = scmp.ne.s32.totalorder %s26, %s29
      %p38 = scmp.eq.s32.totalorder %s21, 1
      %p39 = por %p37, %p38
      %p40 = scmp.ne.s32.totalorder %s29, %s30
      %p41 = scmp.eq.s32.totalorder %s21, 0
      %p42 = por %p40, %p41
      %p43 = scmp.ne.s32.totalorder %s29, %s30
      %p44 = scmp.eq.s32.totalorder %s22, 1
      %p45 = por %p43, %p44
      %p47 = scmp.ne.s32.totalorder %s30, %s46
      %p48 = scmp.eq.s32.totalorder %s22, 0
      %p49 = por %p47, %p48
      %s51 = sadd.s32 %s50, 1
      %p54 = scmp.eq.s32.totalorder %s16, 1
      %p55 = scmp.ne.s32.totalorder %s50, %s52
      %p56 = scmp.eq.s32.totalorder %s16, 0
      %p57 = por %p55, %p56
      %p58 = scmp.ne.s32.totalorder %s50, %s52
      %p59 = scmp.eq.s32.totalorder %s21, 1
      %p60 = por %p58, %p59
      %p61 = scmp.ne.s32.totalorder %s52, %s53
      %p62 = scmp.eq.s32.totalorder %s21, 0
      %p63 = por %p61, %p62
      %p64 = scmp.ne.s32.totalorder %s52, %s53
      %p65 = scmp.eq.s32.totalorder %s22, 1
      %p66 = por %p64, %p65
      %p68 = scmp.ne.s32.totalorder %s53, %s67
      %p69 = scmp.eq.s32.totalorder %s22, 0
      %p70 = por %p68, %p69
      %s72 = sadd.s32 %s71, 1
      %p75 = scmp.eq.s32.totalorder %s16, 1
      %p76 = scmp.ne.s32.totalorder %s71, %s73
      %p77 = scmp.eq.s32.totalorder %s16, 0
      %p78 = por %p76, %p77
      %p79 = scmp.ne.s32.totalorder %s71, %s73
      %p80 = scmp.eq.s32.totalorder %s21, 1
      %p81 = por %p79, %p80
      %p82 = scmp.ne.s32.totalorder %s73, %s74
      %p83 = scmp.eq.s32.totalorder %s21, 0
      %p84 = por %p82, %p83
      %p85 = scmp.ne.s32.totalorder %s73, %s74
      %p86 = scmp.eq.s32.totalorder %s22, 1
      %p87 = por %p85, %p86
      %p89 = scmp.ne.s32.totalorder %s74, %s88
      %p90 = scmp.eq.s32.totalorder %s22, 0
      %p91 = por %p89, %p90
      %s93 = sadd.s32 %s92, 1
      %p96 = scmp.eq.s32.totalorder %s16, 1
      %p97 = scmp.ne.s32.totalorder %s92, %s94
      %p98 = scmp.eq.s32.totalorder %s16, 0
      %p99 = por %p97, %p98
      %p100 = scmp.ne.s32.totalorder %s92, %s94
      %p101 = scmp.eq.s32.totalorder %s21, 1
      %p102 = por %p100, %p101
      %p103 = scmp.ne.s32.totalorder %s94, %s95
      %p104 = scmp.eq.s32.totalorder %s21, 0
      %p105 = por %p103, %p104
      %p106 = scmp.ne.s32.totalorder %s94, %s95
      %p107 = scmp.eq.s32.totalorder %s22, 1
      %p108 = por %p106, %p107
      %p110 = scmp.ne.s32.totalorder %s95, %s109
      %p111 = scmp.eq.s32.totalorder %s22, 0
      %p112 = por %p110, %p111
      %s114 = sadd.s32 %s113, 1
      %p117 = scmp.eq.s32.totalorder %s16, 1
      %p118 = scmp.ne.s32.totalorder %s113, %s115
      %p119 = scmp.eq.s32.totalorder %s16, 0
      %p120 = por %p118, %p119
      %p121 = scmp.ne.s32.totalorder %s113, %s115
      %p122 = scmp.eq.s32.totalorder %s21, 1
      %p123 = por %p121, %p122
      %p124 = scmp.ne.s32.totalorder %s115, %s116
      %p125 = scmp.eq.s32.totalorder %s21, 0
      %p126 = por %p124, %p125
      %p127 = scmp.ne.s32.totalorder %s115, %s116
      %p128 = scmp.eq.s32.totalorder %s22, 1
      %p129 = por %p127, %p128
      %p131 = scmp.ne.s32.totalorder %s116, %s130
      %p132 = scmp.eq.s32.totalorder %s22, 0
      %p133 = por %p131, %p132
      %s135 = sadd.s32 %s134, 1
      %p138 = scmp.eq.s32.totalorder %s16, 1
      %p139 = scmp.ne.s32.totalorder %s134, %s136
      %p140 = scmp.eq.s32.totalorder %s16, 0
      %p141 = por %p139, %p140
      %p142 = scmp.ne.s32.totalorder %s134, %s136
      %p143 = scmp.eq.s32.totalorder %s21, 1
      %p144 = por %p142, %p143
      %p145 = scmp.ne.s32.totalorder %s136, %s137
      %p146 = scmp.eq.s32.totalorder %s21, 0
      %p147 = por %p145, %p146
      %p148 = scmp.ne.s32.totalorder %s136, %s137
      %p149 = scmp.eq.s32.totalorder %s22, 1
      %p150 = por %p148, %p149
      %p152 = scmp.ne.s32.totalorder %s137, %s151
      %p153 = scmp.eq.s32.totalorder %s22, 0
      %p154 = por %p152, %p153
      %s156 = sadd.s32 %s155, 1
      %p159 = scmp.eq.s32.totalorder %s16, 1
      %p160 = scmp.ne.s32.totalorder %s155, %s157
      %p161 = scmp.eq.s32.totalorder %s16, 0
      %p162 = por %p160, %p161
      %p163 = scmp.ne.s32.totalorder %s155, %s157
      %p164 = scmp.eq.s32.totalorder %s21, 1
      %p165 = por %p163, %p164
      %p166 = scmp.ne.s32.totalorder %s157, %s158
      %p167 = scmp.eq.s32.totalorder %s21, 0
      %p168 = por %p166, %p167
      %p169 = scmp.ne.s32.totalorder %s157, %s158
      %p170 = scmp.eq.s32.totalorder %s22, 1
      %p171 = por %p169, %p170
      %p173 = scmp.ne.s32.totalorder %s158, %s172
      %p174 = scmp.eq.s32.totalorder %s22, 0
      %p175 = por %p173, %p174
      %s176 = ssub.s32 %s16, %s23
      %p177 = scmp.eq.s32.totalorder %s176, 0
      %s179 = sadd.s32 %s178, 1
      %s180 = scalar_select %p177, %s178, %s179
      %p183 = pneg %p177
      %p184 = scmp.eq.s32.totalorder %s16, 1
      %p185 = por %p183, %p184
      %p186 = scmp.ne.s32.totalorder %s178, %s181
      %p187 = scmp.eq.s32.totalorder %s16, 0
      %p188 = por %p186, %p187
      %p189 = scmp.ne.s32.totalorder %s178, %s181
      %p190 = scmp.eq.s32.totalorder %s21, 1
      %p191 = por %p189, %p190
      %p192 = scmp.ne.s32.totalorder %s181, %s182
      %p193 = scmp.eq.s32.totalorder %s21, 0
      %p194 = por %p192, %p193
      %p195 = scmp.ne.s32.totalorder %s181, %s182
      %p196 = scmp.eq.s32.totalorder %s22, 1
      %p197 = por %p195, %p196
      %p199 = scmp.ne.s32.totalorder %s182, %s198
      %p200 = scmp.eq.s32.totalorder %s22, 0
      %p201 = por %p199, %p200
      %p202 = scmp.le.s32.totalorder 1, %s16
      %p203 = scmp.lt.s32.totalorder %s16, 3
      %p204 = pnand %p202, %p203
      %p205 = pneg %p204
      // Predicated region
      $region9: #{tpu_custom_call.1} parent=5 // pred_check
        _
      $region10: #{tpu_custom_call.1} parent=5 // pred_check_branch
        %207 = sbr.rel (%p204) target = $region12
      $region11: #{tpu_custom_call.1} parent=5 // pred_region
        %s208 = ssub.s32 %s16, 1
        // Predicated region
        $region13: #{tpu_custom_call.1} parent=11 // pred_check
          %p209 = pneg %p63
        $region14: #{tpu_custom_call.1} parent=11 // pred_check_branch
          %211 = sbr.rel (%p209) target = $region16
        $region15: #{tpu_custom_call.1} parent=11 // pred_region
          _
        $region16: #{tpu_custom_call.1} parent=11 // pred_fallthru
          _
        // Predicated region
        $region17: #{tpu_custom_call.1} parent=11 // pred_check
          %p212 = pneg %p84
        $region18: #{tpu_custom_call.1} parent=11 // pred_check_branch
          %214 = sbr.rel (%p212) target = $region20
        $region19: #{tpu_custom_call.1} parent=11 // pred_region
          _
        $region20: #{tpu_custom_call.1} parent=11 // pred_fallthru
          _
        // Predicated region
        $region21: #{tpu_custom_call.1} parent=11 // pred_check
          %p215 = pneg %p105
        $region22: #{tpu_custom_call.1} parent=11 // pred_check_branch
          %217 = sbr.rel (%p215) target = $region24
        $region23: #{tpu_custom_call.1} parent=11 // pred_region
          _
        $region24: #{tpu_custom_call.1} parent=11 // pred_fallthru
          _
        // Predicated region
        $region25: #{tpu_custom_call.1} parent=11 // pred_check
          %p218 = pneg %p126
        $region26: #{tpu_custom_call.1} parent=11 // pred_check_branch
          %220 = sbr.rel (%p218) target = $region28
        $region27: #{tpu_custom_call.1} parent=11 // pred_region
          _
        $region28: #{tpu_custom_call.1} parent=11 // pred_fallthru
          _
        // Predicated region
        $region29: #{tpu_custom_call.1} parent=11 // pred_check
          %p221 = pneg %p147
        $region30: #{tpu_custom_call.1} parent=11 // pred_check_branch
          %223 = sbr.rel (%p221) target = $region32
        $region31: #{tpu_custom_call.1} parent=11 // pred_region
          _
        $region32: #{tpu_custom_call.1} parent=11 // pred_fallthru
          _
        // Predicated region
        $region33: #{tpu_custom_call.1} parent=11 // pred_check
          %p224 = pneg %p168
        $region34: #{tpu_custom_call.1} parent=11 // pred_check_branch
          %226 = sbr.rel (%p224) target = $region36
        $region35: #{tpu_custom_call.1} parent=11 // pred_region
          _
        $region36: #{tpu_custom_call.1} parent=11 // pred_fallthru
          _
      $region12: #{tpu_custom_call.1} parent=5 // pred_fallthru
        _
      %p227 = scmp.lt.s32.totalorder %s16, 2
      // Predicated region
      $region37: #{tpu_custom_call.1} parent=5 // pred_check
        %p228 = pneg %p227
      $region38: #{tpu_custom_call.1} parent=5 // pred_check_branch
        %230 = sbr.rel (%p228) target = $region40
      $region39: #{tpu_custom_call.1} parent=5 // pred_region
        // Predicated region
        $region41: #{tpu_custom_call.1} parent=39 // pred_check
          %p231 = pneg %p36
        $region42: #{tpu_custom_call.1} parent=39 // pred_check_branch
          %233 = sbr.rel (%p231) target = $region44
        $region43: #{tpu_custom_call.1} parent=39 // pred_region
          %p234 = scmp.lt.s32.totalorder %s16, 1
          %s235 = scalar_select %p234, %s16, 1
          %s236 = smul.addr %s235, 2
          %s237 = smul.addr %s236, 4
          %s238 = scalar_lea.vmem %s0, %s237
        $region44: #{tpu_custom_call.1} parent=39 // pred_fallthru
          _
      $region40: #{tpu_custom_call.1} parent=5 // pred_fallthru
        _
      %p239 = scmp.le.s32.totalorder 1, %s16
      %p240 = scmp.lt.s32.totalorder %s16, 3
      %p241 = pnand %p239, %p240
      %p242 = pneg %p241
      // Predicated region
      $region45: #{tpu_custom_call.1} parent=5 // pred_check
        _
      $region46: #{tpu_custom_call.1} parent=5 // pred_check_branch
        %244 = sbr.rel (%p241) target = $region48
      $region47: #{tpu_custom_call.1} parent=5 // pred_region
        %s245 = ssub.s32 %s16, 1
        %p246 = scmp.lt.s32.totalorder %s21, 1
        %s247 = scalar_select %p246, %s21, 1
        %s248 = smul.addr %s247, 2
        %s249 = smul.addr %s248, 4
        %s250 = scalar_lea.vmem %s0, %s249
        %p251 = pneg %p42
        %p252 = pneg %p39
        %p253 = pneg %p63
        %p254 = pneg %p60
        %p255 = pneg %p84
        %p256 = pneg %p81
        %p257 = pneg %p105
        %p258 = pneg %p102
        %p259 = pneg %p126
        %p260 = pneg %p123
        %p261 = pneg %p147
        %p262 = pneg %p144
        %p263 = pneg %p168
        %p264 = pneg %p165
        %p265 = pneg %p194
        %p266 = pneg %p191
        %s267 = sand.u32 %s181, 1
        %s268 = scalar_lea.sflag [#allocation3], %s267
        %s269 = sand.u32 %s181, 1
        %s270 = smul.addr %s269, 8
        %s271 = scalar_lea.vmem [#allocation2], %s270
        %p272 = scmp.lt.s32.totalorder %s21, 1
        %s273 = scalar_select %p272, %s21, 1
        %s274 = smul.addr %s273, 2
        %s275 = smul.addr %s274, 4
        %s276 = scalar_lea.vmem %s0, %s275
        %v277 = vld [vmem:[%s276] sm:$0xff]
        %v278 = vld [vmem:[%s1] sm:$0xff]
        %v279 = vld [vmem:[%s1 + $0x8] sm:$0xf]
        %v281 = vcombine.high %v277, %v277
        %vm282 = vcmask 31744
        %v284 = vsel %vm282, %v278, 0
        %v287 = vsel %vm282, %v279, 0
        %vm289 = vcmask 1043456
        %v290 = vsel %vm289, %v277, 0
        %v292 = vsel %vm289, %v281, 0
        %294 = vmatprep.subr.mxu0 0.0
        %295 = vmatpush1.msra.mxu0 0.0
        %296 = vmatprep.subr.mxu0 0.0
        %297 = vmatpush1.msra.mxu0 0.0
        %298 = vmatprep.subr.mxu0 0.0
        %299 = vmatpush1.msra.mxu0 0.0
        %300 = vmatprep.subr.mxu0 0.0
        %301 = vmatpush1.msra.mxu0 0.0
        %302 = vmatprep.subr.mxu0 0.0
        %303 = vmatpush1.msra.mxu0 0.0
        %304 = vmatprep.subr.mxu0 0.0
        %305 = vmatpush1.msra.mxu0 0.0
        %306 = vmatprep.subr.mxu0 0.0
        %307 = vmatpush1.msra.mxu0 0.0
        %308 = vmatprep.subr.mxu0 0.0
        %309 = vmatpush1.msra.mxu0 0.0
        %310 = vmatprep.subr.mxu0 0.0
        %311 = vmatpush1.msra.mxu0 0.0
        %312 = vmatprep.subr.mxu0 0.0
        %313 = vmatpush1.msra.mxu0 0.0
        %314 = vmatprep.subr.mxu0 0.0
        %315 = vmatpush1.msra.mxu0 0.0
        %316 = vmatprep.subr.mxu0 0.0
        %317 = vmatpush1.msra.mxu0 0.0
        %318 = vmatprep.subr.mxu0 0.0
        %319 = vmatpush1.msra.mxu0 0.0
        %320 = vmatprep.subr.mxu0 0.0
        %321 = vmatpush1.msra.mxu0 0.0
        %322 = vmatprep.subr.mxu0 0.0
        %323 = vmatpush1.msra.mxu0 0.0
        %324 = vmatprep.subr.mxu0 %v292
        %325 = vmatpush1.msra.mxu0 %v290
        %326 = vmatprep.subr.mxu0 0.0
        %327 = vmatpush2.msra.mxu0 0.0
        %328 = vmatprep.subr.mxu0 0.0
        %329 = vmatpush2.msra.mxu0 0.0
        %330 = vmatprep.subr.mxu0 0.0
        %331 = vmatpush2.msra.mxu0 0.0
        %332 = vmatprep.subr.mxu0 0.0
        %333 = vmatpush2.msra.mxu0 0.0
        %334 = vmatprep.subr.mxu0 0.0
        %335 = vmatpush2.msra.mxu0 0.0
        %336 = vmatprep.subr.mxu0 0.0
        %337 = vmatpush2.msra.mxu0 0.0
        %338 = vmatprep.subr.mxu0 0.0
        %339 = vmatpush2.msra.mxu0 0.0
        %340 = vmatprep.subr.mxu0 0.0
        %341 = vmatpush2.msra.mxu0 0.0
        %342 = vmatprep.subr.mxu0 0.0
        %343 = vmatpush2.msra.mxu0 0.0
        %344 = vmatprep.subr.mxu0 0.0
        %345 = vmatpush2.msra.mxu0 0.0
        %346 = vmatprep.subr.mxu0 0.0
        %347 = vmatpush2.msra.mxu0 0.0
        %348 = vmatprep.subr.mxu0 0.0
        %349 = vmatpush2.msra.mxu0 0.0
        %350 = vmatprep.subr.mxu0 0.0
        %351 = vmatpush2.msra.mxu0 0.0
        %352 = vmatprep.subr.mxu0 0.0
        %353 = vmatpush2.msra.mxu0 0.0
        %354 = vmatprep.subr.mxu0 0.0
        %355 = vmatpush2.msra.mxu0 0.0
        %356 = vmatprep.subr.mxu0 0.0
        %357 = vmatpush2.msra.mxu0 0.0
        %358 = vmatprep.mubr.f32.mxu0 0.0
        %359 = vmatmul.mubr.f32.gmra.mxu0 %v284
        %v360 = vpop.f32.mrf.mxu0
        %v361 = vadd.f32 0.0, %v360
        %v362 = vpop.f32.mrf.mxu0
        %v363 = vadd.f32 0.0, %v362
        %364 = vmatprep.mubr.f32.mxu0 0.0
        %365 = vmatmul.mubr.f32.gmra.mxu0 %v287
        %v366 = vpop.f32.mrf.mxu0
        %v367 = vadd.f32 0.0, %v366
        %v368 = vpop.f32.mrf.mxu0
        %v369 = vadd.f32 0.0, %v368
        %370 = vdwg.mxu0
        %v371 = vld [vmem:[%s4] sm:$0xff]
        %v372 = vld [vmem:[%s4 + $0x8] sm:$0xff]
        %s373 = scalar_lea.vmem %s2, 16
        %v374 = vld [vmem:[%s373] sm:$0xf]
        %375 = vrot.lane.b32.xlu0 %v361, 17
        %v376 = vpop.permute.xlu0 %375
        %377 = vrot.lane.b32.xlu0 %v363, 17
        %v378 = vpop.permute.xlu0 %377
        %v379 = vlaneseq
        %v380 = vand.u32 %v379, 127
        %vm381 = vcmp.lt.s32.totalorder %v380, 17
        %v382 = vsel %vm381, %v376, %v378
        %v383 = vsel %vm381, %v378, %v376
        %v384 = vld [vmem:[%s2] sm:$0xf]
        %v385 = vlaneseq
        %v386 = vshrl.u32 %v385, 7
        %v387 = vsub.s32 0, %v386
        %v388 = vrot.slane %v371, %v387
        %v389 = vlaneseq
        %v390 = vshrl.u32 %v389, 7
        %v391 = vsub.s32 0, %v390
        %v392 = vrot.slane %v372, %v391
        %v393 = vmul.f32 %v383, %v388
        %v394 = vmul.f32 %v382, %v392
        %vm395 = vcmask 64512
        %v397 = vsel %vm395, %v384, 0
        %399 = vmatprep.subr.mxu0 0.0
        %400 = vmatpush1.msra.mxu0 0.0
        %401 = vmatprep.subr.mxu0 0.0
        %402 = vmatpush1.msra.mxu0 0.0
        %403 = vmatprep.subr.mxu0 0.0
        %404 = vmatpush1.msra.mxu0 0.0
        %405 = vmatprep.subr.mxu0 0.0
        %406 = vmatpush1.msra.mxu0 0.0
        %407 = vmatprep.subr.mxu0 0.0
        %408 = vmatpush1.msra.mxu0 0.0
        %409 = vmatprep.subr.mxu0 0.0
        %410 = vmatpush1.msra.mxu0 0.0
        %411 = vmatprep.subr.mxu0 0.0
        %412 = vmatpush1.msra.mxu0 0.0
        %413 = vmatprep.subr.mxu0 0.0
        %414 = vmatpush1.msra.mxu0 0.0
        %415 = vmatprep.subr.mxu0 0.0
        %416 = vmatpush1.msra.mxu0 0.0
        %417 = vmatprep.subr.mxu0 0.0
        %418 = vmatpush1.msra.mxu0 0.0
        %419 = vmatprep.subr.mxu0 0.0
        %420 = vmatpush1.msra.mxu0 0.0
        %421 = vmatprep.subr.mxu0 0.0
        %422 = vmatpush1.msra.mxu0 0.0
        %423 = vmatprep.subr.mxu0 0.0
        %424 = vmatpush1.msra.mxu0 0.0
        %425 = vmatprep.subr.mxu0 0.0
        %426 = vmatpush1.msra.mxu0 0.0
        %427 = vmatprep.subr.mxu0 0.0
        %428 = vmatpush1.msra.mxu0 0.0
        %429 = vmatprep.subr.mxu0 %v394
        %430 = vmatpush1.msra.mxu0 %v393
        %431 = vmatprep.subr.mxu0 0.0
        %432 = vmatpush2.msra.mxu0 0.0
        %433 = vmatprep.subr.mxu0 0.0
        %434 = vmatpush2.msra.mxu0 0.0
        %435 = vmatprep.subr.mxu0 0.0
        %436 = vmatpush2.msra.mxu0 0.0
        %437 = vmatprep.subr.mxu0 0.0
        %438 = vmatpush2.msra.mxu0 0.0
        %439 = vmatprep.subr.mxu0 0.0
        %440 = vmatpush2.msra.mxu0 0.0
        %441 = vmatprep.subr.mxu0 0.0
        %442 = vmatpush2.msra.mxu0 0.0
        %443 = vmatprep.subr.mxu0 0.0
        %444 = vmatpush2.msra.mxu0 0.0
        %445 = vmatprep.subr.mxu0 0.0
        %446 = vmatpush2.msra.mxu0 0.0
        %447 = vmatprep.subr.mxu0 0.0
        %448 = vmatpush2.msra.mxu0 0.0
        %449 = vmatprep.subr.mxu0 0.0
        %450 = vmatpush2.msra.mxu0 0.0
        %451 = vmatprep.subr.mxu0 0.0
        %452 = vmatpush2.msra.mxu0 0.0
        %453 = vmatprep.subr.mxu0 0.0
        %454 = vmatpush2.msra.mxu0 0.0
        %455 = vmatprep.subr.mxu0 0.0
        %456 = vmatpush2.msra.mxu0 0.0
        %457 = vmatprep.subr.mxu0 0.0
        %458 = vmatpush2.msra.mxu0 0.0
        %459 = vmatprep.subr.mxu0 0.0
        %460 = vmatpush2.msra.mxu0 0.0
        %461 = vmatprep.subr.mxu0 0.0
        %462 = vmatpush2.msra.mxu0 0.0
        %463 = vmatprep.mubr.f32.mxu0 0.0
        %464 = vmatmul.mubr.f32.gmra.mxu0 %v397
        %v465 = vpop.f32.mrf.mxu0
        %v466 = vadd.f32 0.0, %v465
        %v467 = vpop.f32.mrf.mxu0
        %v468 = vadd.f32 0.0, %v467
        %469 = vdwg.mxu0
        %v471 = vsel %vm395, %v374, 0
        %473 = vmatprep.subr.mxu0 0.0
        %474 = vmatpush1.msra.mxu0 0.0
        %475 = vmatprep.subr.mxu0 0.0
        %476 = vmatpush1.msra.mxu0 0.0
        %477 = vmatprep.subr.mxu0 0.0
        %478 = vmatpush1.msra.mxu0 0.0
        %479 = vmatprep.subr.mxu0 0.0
        %480 = vmatpush1.msra.mxu0 0.0
        %481 = vmatprep.subr.mxu0 0.0
        %482 = vmatpush1.msra.mxu0 0.0
        %483 = vmatprep.subr.mxu0 0.0
        %484 = vmatpush1.msra.mxu0 0.0
        %485 = vmatprep.subr.mxu0 0.0
        %486 = vmatpush1.msra.mxu0 0.0
        %487 = vmatprep.subr.mxu0 0.0
        %488 = vmatpush1.msra.mxu0 0.0
        %489 = vmatprep.subr.mxu0 0.0
        %490 = vmatpush1.msra.mxu0 0.0
        %491 = vmatprep.subr.mxu0 0.0
        %492 = vmatpush1.msra.mxu0 0.0
        %493 = vmatprep.subr.mxu0 0.0
        %494 = vmatpush1.msra.mxu0 0.0
        %495 = vmatprep.subr.mxu0 0.0
        %496 = vmatpush1.msra.mxu0 0.0
        %497 = vmatprep.subr.mxu0 0.0
        %498 = vmatpush1.msra.mxu0 0.0
        %499 = vmatprep.subr.mxu0 0.0
        %500 = vmatpush1.msra.mxu0 0.0
        %501 = vmatprep.subr.mxu0 0.0
        %502 = vmatpush1.msra.mxu0 0.0
        %503 = vmatprep.subr.mxu0 %v363
        %504 = vmatpush1.msra.mxu0 %v361
        %505 = vmatprep.subr.mxu0 0.0
        %506 = vmatpush2.msra.mxu0 0.0
        %507 = vmatprep.subr.mxu0 0.0
        %508 = vmatpush2.msra.mxu0 0.0
        %509 = vmatprep.subr.mxu0 0.0
        %510 = vmatpush2.msra.mxu0 0.0
        %511 = vmatprep.subr.mxu0 0.0
        %512 = vmatpush2.msra.mxu0 0.0
        %513 = vmatprep.subr.mxu0 0.0
        %514 = vmatpush2.msra.mxu0 0.0
        %515 = vmatprep.subr.mxu0 0.0
        %516 = vmatpush2.msra.mxu0 0.0
        %517 = vmatprep.subr.mxu0 0.0
        %518 = vmatpush2.msra.mxu0 0.0
        %519 = vmatprep.subr.mxu0 0.0
        %520 = vmatpush2.msra.mxu0 0.0
        %521 = vmatprep.subr.mxu0 0.0
        %522 = vmatpush2.msra.mxu0 0.0
        %523 = vmatprep.subr.mxu0 0.0
        %524 = vmatpush2.msra.mxu0 0.0
        %525 = vmatprep.subr.mxu0 0.0
        %526 = vmatpush2.msra.mxu0 0.0
        %527 = vmatprep.subr.mxu0 0.0
        %528 = vmatpush2.msra.mxu0 0.0
        %529 = vmatprep.subr.mxu0 0.0
        %530 = vmatpush2.msra.mxu0 0.0
        %531 = vmatprep.subr.mxu0 0.0
        %532 = vmatpush2.msra.mxu0 0.0
        %533 = vmatprep.subr.mxu0 0.0
        %534 = vmatpush2.msra.mxu0 0.0
        %535 = vmatprep.subr.mxu0 0.0
        %536 = vmatpush2.msra.mxu0 0.0
        %537 = vmatprep.mubr.f32.mxu0 0.0
        %538 = vmatmul.mubr.f32.gmra.mxu0 %v471
        %v539 = vpop.f32.mrf.mxu0
        %v540 = vadd.f32 %v466, %v539
        %v541 = vpop.f32.mrf.mxu0
        %v542 = vadd.f32 %v468, %v541
        %543 = vdwg.mxu0
        %544 = vrot.lane.b32.xlu0 %v361, 16
        %v545 = vpop.permute.xlu0 %544
        %546 = vrot.lane.b32.xlu0 %v363, 16
        %v547 = vpop.permute.xlu0 %546
        %vm548 = vcmp.lt.s32.totalorder %v380, 16
        %v549 = vsel %vm548, %v545, %v547
        %v550 = vsel %vm548, %v547, %v545
        %s551 = scalar_lea.vmem %s2, 4
        %v552 = vld [vmem:[%s551] sm:$0xf]
        %v553 = vlaneseq
        %v554 = vshrl.u32 %v553, 7
        %v555 = vsub.s32 1, %v554
        %v556 = vrot.slane %v371, %v555
        %v557 = vlaneseq
        %v558 = vshrl.u32 %v557, 7
        %v559 = vsub.s32 1, %v558
        %v560 = vrot.slane %v372, %v559
        %v561 = vmul.f32 %v550, %v556
        %v562 = vmul.f32 %v549, %v560
        %v564 = vsel %vm395, %v552, 0
        %566 = vmatprep.subr.mxu0 0.0
        %567 = vmatpush1.msra.mxu0 0.0
        %568 = vmatprep.subr.mxu0 0.0
        %569 = vmatpush1.msra.mxu0 0.0
        %570 = vmatprep.subr.mxu0 0.0
        %571 = vmatpush1.msra.mxu0 0.0
        %572 = vmatprep.subr.mxu0 0.0
        %573 = vmatpush1.msra.mxu0 0.0
        %574 = vmatprep.subr.mxu0 0.0
        %575 = vmatpush1.msra.mxu0 0.0
        %576 = vmatprep.subr.mxu0 0.0
        %577 = vmatpush1.msra.mxu0 0.0
        %578 = vmatprep.subr.mxu0 0.0
        %579 = vmatpush1.msra.mxu0 0.0
        %580 = vmatprep.subr.mxu0 0.0
        %581 = vmatpush1.msra.mxu0 0.0
        %582 = vmatprep.subr.mxu0 0.0
        %583 = vmatpush1.msra.mxu0 0.0
        %584 = vmatprep.subr.mxu0 0.0
        %585 = vmatpush1.msra.mxu0 0.0
        %586 = vmatprep.subr.mxu0 0.0
        %587 = vmatpush1.msra.mxu0 0.0
        %588 = vmatprep.subr.mxu0 0.0
        %589 = vmatpush1.msra.mxu0 0.0
        %590 = vmatprep.subr.mxu0 0.0
        %591 = vmatpush1.msra.mxu0 0.0
        %592 = vmatprep.subr.mxu0 0.0
        %593 = vmatpush1.msra.mxu0 0.0
        %594 = vmatprep.subr.mxu0 0.0
        %595 = vmatpush1.msra.mxu0 0.0
        %596 = vmatprep.subr.mxu0 %v562
        %597 = vmatpush1.msra.mxu0 %v561
        %598 = vmatprep.subr.mxu0 0.0
        %599 = vmatpush2.msra.mxu0 0.0
        %600 = vmatprep.subr.mxu0 0.0
        %601 = vmatpush2.msra.mxu0 0.0
        %602 = vmatprep.subr.mxu0 0.0
        %603 = vmatpush2.msra.mxu0 0.0
        %604 = vmatprep.subr.mxu0 0.0
        %605 = vmatpush2.msra.mxu0 0.0
        %606 = vmatprep.subr.mxu0 0.0
        %607 = vmatpush2.msra.mxu0 0.0
        %608 = vmatprep.subr.mxu0 0.0
        %609 = vmatpush2.msra.mxu0 0.0
        %610 = vmatprep.subr.mxu0 0.0
        %611 = vmatpush2.msra.mxu0 0.0
        %612 = vmatprep.subr.mxu0 0.0
        %613 = vmatpush2.msra.mxu0 0.0
        %614 = vmatprep.subr.mxu0 0.0
        %615 = vmatpush2.msra.mxu0 0.0
        %616 = vmatprep.subr.mxu0 0.0
        %617 = vmatpush2.msra.mxu0 0.0
        %618 = vmatprep.subr.mxu0 0.0
        %619 = vmatpush2.msra.mxu0 0.0
        %620 = vmatprep.subr.mxu0 0.0
        %621 = vmatpush2.msra.mxu0 0.0
        %622 = vmatprep.subr.mxu0 0.0
        %623 = vmatpush2.msra.mxu0 0.0
        %624 = vmatprep.subr.mxu0 0.0
        %625 = vmatpush2.msra.mxu0 0.0
        %626 = vmatprep.subr.mxu0 0.0
        %627 = vmatpush2.msra.mxu0 0.0
        %628 = vmatprep.subr.mxu0 0.0
        %629 = vmatpush2.msra.mxu0 0.0
        %630 = vmatprep.mubr.f32.mxu0 0.0
        %631 = vmatmul.mubr.f32.gmra.mxu0 %v564
        %v632 = vpop.f32.mrf.mxu0
        %v633 = vadd.f32 0.0, %v632
        %v634 = vpop.f32.mrf.mxu0
        %v635 = vadd.f32 0.0, %v634
        %636 = vdwg.mxu0
        %v637 = vadd.f32 %v540, %v633
        %v638 = vadd.f32 %v542, %v635
        %639 = vrot.lane.b32.xlu0 %v361, 15
        %v640 = vpop.permute.xlu0 %639
        %641 = vrot.lane.b32.xlu0 %v363, 15
        %v642 = vpop.permute.xlu0 %641
        %vm643 = vcmp.lt.s32.totalorder %v380, 15
        %v644 = vsel %vm643, %v640, %v642
        %v645 = vsel %vm643, %v642, %v640
        %s646 = scalar_lea.vmem %s2, 8
        %v647 = vld [vmem:[%s646] sm:$0xf]
        %v648 = vlaneseq
        %v649 = vshrl.u32 %v648, 7
        %v650 = vsub.s32 2, %v649
        %v651 = vrot.slane %v371, %v650
        %v652 = vlaneseq
        %v653 = vshrl.u32 %v652, 7
        %v654 = vsub.s32 2, %v653
        %v655 = vrot.slane %v372, %v654
        %v656 = vmul.f32 %v645, %v651
        %v657 = vmul.f32 %v644, %v655
        %v659 = vsel %vm395, %v647, 0
        %661 = vmatprep.subr.mxu0 0.0
        %662 = vmatpush1.msra.mxu0 0.0
        %663 = vmatprep.subr.mxu0 0.0
        %664 = vmatpush1.msra.mxu0 0.0
        %665 = vmatprep.subr.mxu0 0.0
        %666 = vmatpush1.msra.mxu0 0.0
        %667 = vmatprep.subr.mxu0 0.0
        %668 = vmatpush1.msra.mxu0 0.0
        %669 = vmatprep.subr.mxu0 0.0
        %670 = vmatpush1.msra.mxu0 0.0
        %671 = vmatprep.subr.mxu0 0.0
        %672 = vmatpush1.msra.mxu0 0.0
        %673 = vmatprep.subr.mxu0 0.0
        %674 = vmatpush1.msra.mxu0 0.0
        %675 = vmatprep.subr.mxu0 0.0
        %676 = vmatpush1.msra.mxu0 0.0
        %677 = vmatprep.subr.mxu0 0.0
        %678 = vmatpush1.msra.mxu0 0.0
        %679 = vmatprep.subr.mxu0 0.0
        %680 = vmatpush1.msra.mxu0 0.0
        %681 = vmatprep.subr.mxu0 0.0
        %682 = vmatpush1.msra.mxu0 0.0
        %683 = vmatprep.subr.mxu0 0.0
        %684 = vmatpush1.msra.mxu0 0.0
        %685 = vmatprep.subr.mxu0 0.0
        %686 = vmatpush1.msra.mxu0 0.0
        %687 = vmatprep.subr.mxu0 0.0
        %688 = vmatpush1.msra.mxu0 0.0
        %689 = vmatprep.subr.mxu0 0.0
        %690 = vmatpush1.msra.mxu0 0.0
        %691 = vmatprep.subr.mxu0 %v657
        %692 = vmatpush1.msra.mxu0 %v656
        %693 = vmatprep.subr.mxu0 0.0
        %694 = vmatpush2.msra.mxu0 0.0
        %695 = vmatprep.subr.mxu0 0.0
        %696 = vmatpush2.msra.mxu0 0.0
        %697 = vmatprep.subr.mxu0 0.0
        %698 = vmatpush2.msra.mxu0 0.0
        %699 = vmatprep.subr.mxu0 0.0
        %700 = vmatpush2.msra.mxu0 0.0
        %701 = vmatprep.subr.mxu0 0.0
        %702 = vmatpush2.msra.mxu0 0.0
        %703 = vmatprep.subr.mxu0 0.0
        %704 = vmatpush2.msra.mxu0 0.0
        %705 = vmatprep.subr.mxu0 0.0
        %706 = vmatpush2.msra.mxu0 0.0
        %707 = vmatprep.subr.mxu0 0.0
        %708 = vmatpush2.msra.mxu0 0.0
        %709 = vmatprep.subr.mxu0 0.0
        %710 = vmatpush2.msra.mxu0 0.0
        %711 = vmatprep.subr.mxu0 0.0
        %712 = vmatpush2.msra.mxu0 0.0
        %713 = vmatprep.subr.mxu0 0.0
        %714 = vmatpush2.msra.mxu0 0.0
        %715 = vmatprep.subr.mxu0 0.0
        %716 = vmatpush2.msra.mxu0 0.0
        %717 = vmatprep.subr.mxu0 0.0
        %718 = vmatpush2.msra.mxu0 0.0
        %719 = vmatprep.subr.mxu0 0.0
        %720 = vmatpush2.msra.mxu0 0.0
        %721 = vmatprep.subr.mxu0 0.0
        %722 = vmatpush2.msra.mxu0 0.0
        %723 = vmatprep.subr.mxu0 0.0
        %724 = vmatpush2.msra.mxu0 0.0
        %725 = vmatprep.mubr.f32.mxu0 0.0
        %726 = vmatmul.mubr.f32.gmra.mxu0 %v659
        %v727 = vpop.f32.mrf.mxu0
        %v728 = vadd.f32 0.0, %v727
        %v729 = vpop.f32.mrf.mxu0
        %v730 = vadd.f32 0.0, %v729
        %731 = vdwg.mxu0
        %v732 = vadd.f32 %v637, %v728
        %v733 = vadd.f32 %v638, %v730
        %734 = vrot.lane.b32.xlu0 %v361, 1
        %v735 = vpop.permute.xlu0 %734
        %736 = vrot.lane.b32.xlu0 %v363, 1
        %v737 = vpop.permute.xlu0 %736
        %vm738 = vcmp.lt.s32.totalorder %v380, 1
        %v739 = vsel %vm738, %v735, %v737
        %v740 = vsel %vm738, %v737, %v735
        %s741 = scalar_lea.vmem %s2, 12
        %v742 = vld [vmem:[%s741] sm:$0xf]
        %v743 = vlaneseq
        %v744 = vshrl.u32 %v743, 7
        %v745 = vsub.s32 3, %v744
        %v746 = vrot.slane %v371, %v745
        %v747 = vlaneseq
        %v748 = vshrl.u32 %v747, 7
        %v749 = vsub.s32 3, %v748
        %v750 = vrot.slane %v372, %v749
        %v751 = vmul.f32 %v740, %v746
        %v752 = vmul.f32 %v739, %v750
        %v754 = vsel %vm395, %v742, 0
        %756 = vmatprep.subr.mxu0 0.0
        %757 = vmatpush1.msra.mxu0 0.0
        %758 = vmatprep.subr.mxu0 0.0
        %759 = vmatpush1.msra.mxu0 0.0
        %760 = vmatprep.subr.mxu0 0.0
        %761 = vmatpush1.msra.mxu0 0.0
        %762 = vmatprep.subr.mxu0 0.0
        %763 = vmatpush1.msra.mxu0 0.0
        %764 = vmatprep.subr.mxu0 0.0
        %765 = vmatpush1.msra.mxu0 0.0
        %766 = vmatprep.subr.mxu0 0.0
        %767 = vmatpush1.msra.mxu0 0.0
        %768 = vmatprep.subr.mxu0 0.0
        %769 = vmatpush1.msra.mxu0 0.0
        %770 = vmatprep.subr.mxu0 0.0
        %771 = vmatpush1.msra.mxu0 0.0
        %772 = vmatprep.subr.mxu0 0.0
        %773 = vmatpush1.msra.mxu0 0.0
        %774 = vmatprep.subr.mxu0 0.0
        %775 = vmatpush1.msra.mxu0 0.0
        %776 = vmatprep.subr.mxu0 0.0
        %777 = vmatpush1.msra.mxu0 0.0
        %778 = vmatprep.subr.mxu0 0.0
        %779 = vmatpush1.msra.mxu0 0.0
        %780 = vmatprep.subr.mxu0 0.0
        %781 = vmatpush1.msra.mxu0 0.0
        %782 = vmatprep.subr.mxu0 0.0
        %783 = vmatpush1.msra.mxu0 0.0
        %784 = vmatprep.subr.mxu0 0.0
        %785 = vmatpush1.msra.mxu0 0.0
        %786 = vmatprep.subr.mxu0 %v752
        %787 = vmatpush1.msra.mxu0 %v751
        %788 = vmatprep.subr.mxu0 0.0
        %789 = vmatpush2.msra.mxu0 0.0
        %790 = vmatprep.subr.mxu0 0.0
        %791 = vmatpush2.msra.mxu0 0.0
        %792 = vmatprep.subr.mxu0 0.0
        %793 = vmatpush2.msra.mxu0 0.0
        %794 = vmatprep.subr.mxu0 0.0
        %795 = vmatpush2.msra.mxu0 0.0
        %796 = vmatprep.subr.mxu0 0.0
        %797 = vmatpush2.msra.mxu0 0.0
        %798 = vmatprep.subr.mxu0 0.0
        %799 = vmatpush2.msra.mxu0 0.0
        %800 = vmatprep.subr.mxu0 0.0
        %801 = vmatpush2.msra.mxu0 0.0
        %802 = vmatprep.subr.mxu0 0.0
        %803 = vmatpush2.msra.mxu0 0.0
        %804 = vmatprep.subr.mxu0 0.0
        %805 = vmatpush2.msra.mxu0 0.0
        %806 = vmatprep.subr.mxu0 0.0
        %807 = vmatpush2.msra.mxu0 0.0
        %808 = vmatprep.subr.mxu0 0.0
        %809 = vmatpush2.msra.mxu0 0.0
        %810 = vmatprep.subr.mxu0 0.0
        %811 = vmatpush2.msra.mxu0 0.0
        %812 = vmatprep.subr.mxu0 0.0
        %813 = vmatpush2.msra.mxu0 0.0
        %814 = vmatprep.subr.mxu0 0.0
        %815 = vmatpush2.msra.mxu0 0.0
        %816 = vmatprep.subr.mxu0 0.0
        %817 = vmatpush2.msra.mxu0 0.0
        %818 = vmatprep.subr.mxu0 0.0
        %819 = vmatpush2.msra.mxu0 0.0
        %820 = vmatprep.mubr.f32.mxu0 0.0
        %821 = vmatmul.mubr.f32.gmra.mxu0 %v754
        %v822 = vpop.f32.mrf.mxu0
        %v823 = vadd.f32 0.0, %v822
        %v824 = vpop.f32.mrf.mxu0
        %v825 = vadd.f32 0.0, %v824
        %826 = vdwg.mxu0
        %v827 = vadd.f32 %v732, %v823
        %v828 = vadd.f32 %v733, %v825
        %829 = vrot.lane.b32.xlu0 %v361, 127
        %v830 = vpop.permute.xlu0 %829
        %831 = vrot.lane.b32.xlu0 %v363, 127
        %v832 = vpop.permute.xlu0 %831
        %vm833 = vcmp.lt.s32.totalorder %v380, 127
        %v834 = vsel %vm833, %v830, %v832
        %v835 = vsel %vm833, %v832, %v830
        %s836 = scalar_lea.vmem %s2, 20
        %v837 = vld [vmem:[%s836] sm:$0xf]
        %v838 = vlaneseq
        %v839 = vshrl.u32 %v838, 7
        %v840 = vsub.s32 4, %v839
        %v841 = vrot.slane %v371, %v840
        %v842 = vlaneseq
        %v843 = vshrl.u32 %v842, 7
        %v844 = vsub.s32 4, %v843
        %v845 = vrot.slane %v372, %v844
        %v846 = vmul.f32 %v834, %v841
        %v847 = vmul.f32 %v835, %v845
        %v849 = vsel %vm395, %v837, 0
        %851 = vmatprep.subr.mxu0 0.0
        %852 = vmatpush1.msra.mxu0 0.0
        %853 = vmatprep.subr.mxu0 0.0
        %854 = vmatpush1.msra.mxu0 0.0
        %855 = vmatprep.subr.mxu0 0.0
        %856 = vmatpush1.msra.mxu0 0.0
        %857 = vmatprep.subr.mxu0 0.0
        %858 = vmatpush1.msra.mxu0 0.0
        %859 = vmatprep.subr.mxu0 0.0
        %860 = vmatpush1.msra.mxu0 0.0
        %861 = vmatprep.subr.mxu0 0.0
        %862 = vmatpush1.msra.mxu0 0.0
        %863 = vmatprep.subr.mxu0 0.0
        %864 = vmatpush1.msra.mxu0 0.0
        %865 = vmatprep.subr.mxu0 0.0
        %866 = vmatpush1.msra.mxu0 0.0
        %867 = vmatprep.subr.mxu0 0.0
        %868 = vmatpush1.msra.mxu0 0.0
        %869 = vmatprep.subr.mxu0 0.0
        %870 = vmatpush1.msra.mxu0 0.0
        %871 = vmatprep.subr.mxu0 0.0
        %872 = vmatpush1.msra.mxu0 0.0
        %873 = vmatprep.subr.mxu0 0.0
        %874 = vmatpush1.msra.mxu0 0.0
        %875 = vmatprep.subr.mxu0 0.0
        %876 = vmatpush1.msra.mxu0 0.0
        %877 = vmatprep.subr.mxu0 0.0
        %878 = vmatpush1.msra.mxu0 0.0
        %879 = vmatprep.subr.mxu0 0.0
        %880 = vmatpush1.msra.mxu0 0.0
        %881 = vmatprep.subr.mxu0 %v847
        %882 = vmatpush1.msra.mxu0 %v846
        %883 = vmatprep.subr.mxu0 0.0
        %884 = vmatpush2.msra.mxu0 0.0
        %885 = vmatprep.subr.mxu0 0.0
        %886 = vmatpush2.msra.mxu0 0.0
        %887 = vmatprep.subr.mxu0 0.0
        %888 = vmatpush2.msra.mxu0 0.0
        %889 = vmatprep.subr.mxu0 0.0
        %890 = vmatpush2.msra.mxu0 0.0
        %891 = vmatprep.subr.mxu0 0.0
        %892 = vmatpush2.msra.mxu0 0.0
        %893 = vmatprep.subr.mxu0 0.0
        %894 = vmatpush2.msra.mxu0 0.0
        %895 = vmatprep.subr.mxu0 0.0
        %896 = vmatpush2.msra.mxu0 0.0
        %897 = vmatprep.subr.mxu0 0.0
        %898 = vmatpush2.msra.mxu0 0.0
        %899 = vmatprep.subr.mxu0 0.0
        %900 = vmatpush2.msra.mxu0 0.0
        %901 = vmatprep.subr.mxu0 0.0
        %902 = vmatpush2.msra.mxu0 0.0
        %903 = vmatprep.subr.mxu0 0.0
        %904 = vmatpush2.msra.mxu0 0.0
        %905 = vmatprep.subr.mxu0 0.0
        %906 = vmatpush2.msra.mxu0 0.0
        %907 = vmatprep.subr.mxu0 0.0
        %908 = vmatpush2.msra.mxu0 0.0
        %909 = vmatprep.subr.mxu0 0.0
        %910 = vmatpush2.msra.mxu0 0.0
        %911 = vmatprep.subr.mxu0 0.0
        %912 = vmatpush2.msra.mxu0 0.0
        %913 = vmatprep.subr.mxu0 0.0
        %914 = vmatpush2.msra.mxu0 0.0
        %915 = vmatprep.mubr.f32.mxu0 0.0
        %916 = vmatmul.mubr.f32.gmra.mxu0 %v849
        %v917 = vpop.f32.mrf.mxu0
        %v918 = vadd.f32 0.0, %v917
        %v919 = vpop.f32.mrf.mxu0
        %v920 = vadd.f32 0.0, %v919
        %921 = vdwg.mxu0
        %v922 = vadd.f32 %v827, %v918
        %v923 = vadd.f32 %v828, %v920
        %924 = vrot.lane.b32.xlu0 %v361, 113
        %v925 = vpop.permute.xlu0 %924
        %926 = vrot.lane.b32.xlu0 %v363, 113
        %v927 = vpop.permute.xlu0 %926
        %vm928 = vcmp.lt.s32.totalorder %v380, 113
        %v929 = vsel %vm928, %v925, %v927
        %v930 = vsel %vm928, %v927, %v925
        %s931 = scalar_lea.vmem %s2, 24
        %v932 = vld [vmem:[%s931] sm:$0xf]
        %v933 = vlaneseq
        %v934 = vshrl.u32 %v933, 7
        %v935 = vsub.s32 5, %v934
        %v936 = vrot.slane %v371, %v935
        %v937 = vlaneseq
        %v938 = vshrl.u32 %v937, 7
        %v939 = vsub.s32 5, %v938
        %v940 = vrot.slane %v372, %v939
        %v941 = vmul.f32 %v929, %v936
        %v942 = vmul.f32 %v930, %v940
        %v944 = vsel %vm395, %v932, 0
        %946 = vmatprep.subr.mxu0 0.0
        %947 = vmatpush1.msra.mxu0 0.0
        %948 = vmatprep.subr.mxu0 0.0
        %949 = vmatpush1.msra.mxu0 0.0
        %950 = vmatprep.subr.mxu0 0.0
        %951 = vmatpush1.msra.mxu0 0.0
        %952 = vmatprep.subr.mxu0 0.0
        %953 = vmatpush1.msra.mxu0 0.0
        %954 = vmatprep.subr.mxu0 0.0
        %955 = vmatpush1.msra.mxu0 0.0
        %956 = vmatprep.subr.mxu0 0.0
        %957 = vmatpush1.msra.mxu0 0.0
        %958 = vmatprep.subr.mxu0 0.0
        %959 = vmatpush1.msra.mxu0 0.0
        %960 = vmatprep.subr.mxu0 0.0
        %961 = vmatpush1.msra.mxu0 0.0
        %962 = vmatprep.subr.mxu0 0.0
        %963 = vmatpush1.msra.mxu0 0.0
        %964 = vmatprep.subr.mxu0 0.0
        %965 = vmatpush1.msra.mxu0 0.0
        %966 = vmatprep.subr.mxu0 0.0
        %967 = vmatpush1.msra.mxu0 0.0
        %968 = vmatprep.subr.mxu0 0.0
        %969 = vmatpush1.msra.mxu0 0.0
        %970 = vmatprep.subr.mxu0 0.0
        %971 = vmatpush1.msra.mxu0 0.0
        %972 = vmatprep.subr.mxu0 0.0
        %973 = vmatpush1.msra.mxu0 0.0
        %974 = vmatprep.subr.mxu0 0.0
        %975 = vmatpush1.msra.mxu0 0.0
        %976 = vmatprep.subr.mxu0 %v942
        %977 = vmatpush1.msra.mxu0 %v941
        %978 = vmatprep.subr.mxu0 0.0
        %979 = vmatpush2.msra.mxu0 0.0
        %980 = vmatprep.subr.mxu0 0.0
        %981 = vmatpush2.msra.mxu0 0.0
        %982 = vmatprep.subr.mxu0 0.0
        %983 = vmatpush2.msra.mxu0 0.0
        %984 = vmatprep.subr.mxu0 0.0
        %985 = vmatpush2.msra.mxu0 0.0
        %986 = vmatprep.subr.mxu0 0.0
        %987 = vmatpush2.msra.mxu0 0.0
        %988 = vmatprep.subr.mxu0 0.0
        %989 = vmatpush2.msra.mxu0 0.0
        %990 = vmatprep.subr.mxu0 0.0
        %991 = vmatpush2.msra.mxu0 0.0
        %992 = vmatprep.subr.mxu0 0.0
        %993 = vmatpush2.msra.mxu0 0.0
        %994 = vmatprep.subr.mxu0 0.0
        %995 = vmatpush2.msra.mxu0 0.0
        %996 = vmatprep.subr.mxu0 0.0
        %997 = vmatpush2.msra.mxu0 0.0
        %998 = vmatprep.subr.mxu0 0.0
        %999 = vmatpush2.msra.mxu0 0.0
        %1000 = vmatprep.subr.mxu0 0.0
        %1001 = vmatpush2.msra.mxu0 0.0
        %1002 = vmatprep.subr.mxu0 0.0
        %1003 = vmatpush2.msra.mxu0 0.0
        %1004 = vmatprep.subr.mxu0 0.0
        %1005 = vmatpush2.msra.mxu0 0.0
        %1006 = vmatprep.subr.mxu0 0.0
        %1007 = vmatpush2.msra.mxu0 0.0
        %1008 = vmatprep.subr.mxu0 0.0
        %1009 = vmatpush2.msra.mxu0 0.0
        %1010 = vmatprep.mubr.f32.mxu0 0.0
        %1011 = vmatmul.mubr.f32.gmra.mxu0 %v944
        %v1012 = vpop.f32.mrf.mxu0
        %v1013 = vadd.f32 0.0, %v1012
        %v1014 = vpop.f32.mrf.mxu0
        %v1015 = vadd.f32 0.0, %v1014
        %1016 = vdwg.mxu0
        %v1017 = vadd.f32 %v922, %v1013
        %v1018 = vadd.f32 %v923, %v1015
        %1019 = vrot.lane.b32.xlu0 %v361, 112
        %v1020 = vpop.permute.xlu0 %1019
        %1021 = vrot.lane.b32.xlu0 %v363, 112
        %v1022 = vpop.permute.xlu0 %1021
        %vm1023 = vcmp.lt.s32.totalorder %v380, 112
        %v1024 = vsel %vm1023, %v1020, %v1022
        %v1025 = vsel %vm1023, %v1022, %v1020
        %s1026 = scalar_lea.vmem %s2, 28
        %v1027 = vld [vmem:[%s1026] sm:$0xf]
        %v1028 = vlaneseq
        %v1029 = vshrl.u32 %v1028, 7
        %v1030 = vsub.s32 6, %v1029
        %v1031 = vrot.slane %v371, %v1030
        %v1032 = vlaneseq
        %v1033 = vshrl.u32 %v1032, 7
        %v1034 = vsub.s32 6, %v1033
        %v1035 = vrot.slane %v372, %v1034
        %v1036 = vmul.f32 %v1024, %v1031
        %v1037 = vmul.f32 %v1025, %v1035
        %v1039 = vsel %vm395, %v1027, 0
        %1041 = vmatprep.subr.mxu0 0.0
        %1042 = vmatpush1.msra.mxu0 0.0
        %1043 = vmatprep.subr.mxu0 0.0
        %1044 = vmatpush1.msra.mxu0 0.0
        %1045 = vmatprep.subr.mxu0 0.0
        %1046 = vmatpush1.msra.mxu0 0.0
        %1047 = vmatprep.subr.mxu0 0.0
        %1048 = vmatpush1.msra.mxu0 0.0
        %1049 = vmatprep.subr.mxu0 0.0
        %1050 = vmatpush1.msra.mxu0 0.0
        %1051 = vmatprep.subr.mxu0 0.0
        %1052 = vmatpush1.msra.mxu0 0.0
        %1053 = vmatprep.subr.mxu0 0.0
        %1054 = vmatpush1.msra.mxu0 0.0
        %1055 = vmatprep.subr.mxu0 0.0
        %1056 = vmatpush1.msra.mxu0 0.0
        %1057 = vmatprep.subr.mxu0 0.0
        %1058 = vmatpush1.msra.mxu0 0.0
        %1059 = vmatprep.subr.mxu0 0.0
        %1060 = vmatpush1.msra.mxu0 0.0
        %1061 = vmatprep.subr.mxu0 0.0
        %1062 = vmatpush1.msra.mxu0 0.0
        %1063 = vmatprep.subr.mxu0 0.0
        %1064 = vmatpush1.msra.mxu0 0.0
        %1065 = vmatprep.subr.mxu0 0.0
        %1066 = vmatpush1.msra.mxu0 0.0
        %1067 = vmatprep.subr.mxu0 0.0
        %1068 = vmatpush1.msra.mxu0 0.0
        %1069 = vmatprep.subr.mxu0 0.0
        %1070 = vmatpush1.msra.mxu0 0.0
        %1071 = vmatprep.subr.mxu0 %v1037
        %1072 = vmatpush1.msra.mxu0 %v1036
        %1073 = vmatprep.subr.mxu0 0.0
        %1074 = vmatpush2.msra.mxu0 0.0
        %1075 = vmatprep.subr.mxu0 0.0
        %1076 = vmatpush2.msra.mxu0 0.0
        %1077 = vmatprep.subr.mxu0 0.0
        %1078 = vmatpush2.msra.mxu0 0.0
        %1079 = vmatprep.subr.mxu0 0.0
        %1080 = vmatpush2.msra.mxu0 0.0
        %1081 = vmatprep.subr.mxu0 0.0
        %1082 = vmatpush2.msra.mxu0 0.0
        %1083 = vmatprep.subr.mxu0 0.0
        %1084 = vmatpush2.msra.mxu0 0.0
        %1085 = vmatprep.subr.mxu0 0.0
        %1086 = vmatpush2.msra.mxu0 0.0
        %1087 = vmatprep.subr.mxu0 0.0
        %1088 = vmatpush2.msra.mxu0 0.0
        %1089 = vmatprep.subr.mxu0 0.0
        %1090 = vmatpush2.msra.mxu0 0.0
        %1091 = vmatprep.subr.mxu0 0.0
        %1092 = vmatpush2.msra.mxu0 0.0
        %1093 = vmatprep.subr.mxu0 0.0
        %1094 = vmatpush2.msra.mxu0 0.0
        %1095 = vmatprep.subr.mxu0 0.0
        %1096 = vmatpush2.msra.mxu0 0.0
        %1097 = vmatprep.subr.mxu0 0.0
        %1098 = vmatpush2.msra.mxu0 0.0
        %1099 = vmatprep.subr.mxu0 0.0
        %1100 = vmatpush2.msra.mxu0 0.0
        %1101 = vmatprep.subr.mxu0 0.0
        %1102 = vmatpush2.msra.mxu0 0.0
        %1103 = vmatprep.subr.mxu0 0.0
        %1104 = vmatpush2.msra.mxu0 0.0
        %1105 = vmatprep.mubr.f32.mxu0 0.0
        %1106 = vmatmul.mubr.f32.gmra.mxu0 %v1039
        %v1107 = vpop.f32.mrf.mxu0
        %v1108 = vadd.f32 0.0, %v1107
        %v1109 = vpop.f32.mrf.mxu0
        %v1110 = vadd.f32 0.0, %v1109
        %1111 = vdwg.mxu0
        %v1112 = vadd.f32 %v1017, %v1108
        %v1113 = vadd.f32 %v1018, %v1110
        %1114 = vrot.lane.b32.xlu0 %v361, 111
        %v1115 = vpop.permute.xlu0 %1114
        %1116 = vrot.lane.b32.xlu0 %v363, 111
        %v1117 = vpop.permute.xlu0 %1116
        %vm1118 = vcmp.lt.s32.totalorder %v380, 111
        %v1119 = vsel %vm1118, %v1115, %v1117
        %v1120 = vsel %vm1118, %v1117, %v1115
        %s1121 = scalar_lea.vmem %s2, 32
        %v1122 = vld [vmem:[%s1121] sm:$0xf]
        %v1123 = vlaneseq
        %v1124 = vshrl.u32 %v1123, 7
        %v1125 = vsub.s32 7, %v1124
        %v1126 = vrot.slane %v371, %v1125
        %v1127 = vlaneseq
        %v1128 = vshrl.u32 %v1127, 7
        %v1129 = vsub.s32 7, %v1128
        %v1130 = vrot.slane %v372, %v1129
        %v1131 = vmul.f32 %v1119, %v1126
        %v1132 = vmul.f32 %v1120, %v1130
        %v1134 = vsel %vm395, %v1122, 0
        %1136 = vmatprep.subr.mxu0 0.0
        %1137 = vmatpush1.msra.mxu0 0.0
        %1138 = vmatprep.subr.mxu0 0.0
        %1139 = vmatpush1.msra.mxu0 0.0
        %1140 = vmatprep.subr.mxu0 0.0
        %1141 = vmatpush1.msra.mxu0 0.0
        %1142 = vmatprep.subr.mxu0 0.0
        %1143 = vmatpush1.msra.mxu0 0.0
        %1144 = vmatprep.subr.mxu0 0.0
        %1145 = vmatpush1.msra.mxu0 0.0
        %1146 = vmatprep.subr.mxu0 0.0
        %1147 = vmatpush1.msra.mxu0 0.0
        %1148 = vmatprep.subr.mxu0 0.0
        %1149 = vmatpush1.msra.mxu0 0.0
        %1150 = vmatprep.subr.mxu0 0.0
        %1151 = vmatpush1.msra.mxu0 0.0
        %1152 = vmatprep.subr.mxu0 0.0
        %1153 = vmatpush1.msra.mxu0 0.0
        %1154 = vmatprep.subr.mxu0 0.0
        %1155 = vmatpush1.msra.mxu0 0.0
        %1156 = vmatprep.subr.mxu0 0.0
        %1157 = vmatpush1.msra.mxu0 0.0
        %1158 = vmatprep.subr.mxu0 0.0
        %1159 = vmatpush1.msra.mxu0 0.0
        %1160 = vmatprep.subr.mxu0 0.0
        %1161 = vmatpush1.msra.mxu0 0.0
        %1162 = vmatprep.subr.mxu0 0.0
        %1163 = vmatpush1.msra.mxu0 0.0
        %1164 = vmatprep.subr.mxu0 0.0
        %1165 = vmatpush1.msra.mxu0 0.0
        %1166 = vmatprep.subr.mxu0 %v1132
        %1167 = vmatpush1.msra.mxu0 %v1131
        %1168 = vmatprep.subr.mxu0 0.0
        %1169 = vmatpush2.msra.mxu0 0.0
        %1170 = vmatprep.subr.mxu0 0.0
        %1171 = vmatpush2.msra.mxu0 0.0
        %1172 = vmatprep.subr.mxu0 0.0
        %1173 = vmatpush2.msra.mxu0 0.0
        %1174 = vmatprep.subr.mxu0 0.0
        %1175 = vmatpush2.msra.mxu0 0.0
        %1176 = vmatprep.subr.mxu0 0.0
        %1177 = vmatpush2.msra.mxu0 0.0
        %1178 = vmatprep.subr.mxu0 0.0
        %1179 = vmatpush2.msra.mxu0 0.0
        %1180 = vmatprep.subr.mxu0 0.0
        %1181 = vmatpush2.msra.mxu0 0.0
        %1182 = vmatprep.subr.mxu0 0.0
        %1183 = vmatpush2.msra.mxu0 0.0
        %1184 = vmatprep.subr.mxu0 0.0
        %1185 = vmatpush2.msra.mxu0 0.0
        %1186 = vmatprep.subr.mxu0 0.0
        %1187 = vmatpush2.msra.mxu0 0.0
        %1188 = vmatprep.subr.mxu0 0.0
        %1189 = vmatpush2.msra.mxu0 0.0
        %1190 = vmatprep.subr.mxu0 0.0
        %1191 = vmatpush2.msra.mxu0 0.0
        %1192 = vmatprep.subr.mxu0 0.0
        %1193 = vmatpush2.msra.mxu0 0.0
        %1194 = vmatprep.subr.mxu0 0.0
        %1195 = vmatpush2.msra.mxu0 0.0
        %1196 = vmatprep.subr.mxu0 0.0
        %1197 = vmatpush2.msra.mxu0 0.0
        %1198 = vmatprep.subr.mxu0 0.0
        %1199 = vmatpush2.msra.mxu0 0.0
        %1200 = vmatprep.mubr.f32.mxu0 0.0
        %1201 = vmatmul.mubr.f32.gmra.mxu0 %v1134
        %v1202 = vpop.f32.mrf.mxu0
        %v1203 = vadd.f32 0.0, %v1202
        %v1204 = vpop.f32.mrf.mxu0
        %v1205 = vadd.f32 0.0, %v1204
        %1206 = vdwg.mxu0
        %v1207 = vadd.f32 %v1112, %v1203
        %v1208 = vadd.f32 %v1113, %v1205
        %v1209 = vld [vmem:[%s3] sm:$0xf]
        %v1211 = vsel %vm282, %v1209, 0
        %v1214 = vsel %vm289, %v1207, 0
        %v1217 = vsel %vm289, %v1208, 0
        %1219 = vmatprep.subr.mxu0 0.0
        %1220 = vmatpush1.msra.mxu0 0.0
        %1221 = vmatprep.subr.mxu0 0.0
        %1222 = vmatpush1.msra.mxu0 0.0
        %1223 = vmatprep.subr.mxu0 0.0
        %1224 = vmatpush1.msra.mxu0 0.0
        %1225 = vmatprep.subr.mxu0 0.0
        %1226 = vmatpush1.msra.mxu0 0.0
        %1227 = vmatprep.subr.mxu0 0.0
        %1228 = vmatpush1.msra.mxu0 0.0
        %1229 = vmatprep.subr.mxu0 0.0
        %1230 = vmatpush1.msra.mxu0 0.0
        %1231 = vmatprep.subr.mxu0 0.0
        %1232 = vmatpush1.msra.mxu0 0.0
        %1233 = vmatprep.subr.mxu0 0.0
        %1234 = vmatpush1.msra.mxu0 0.0
        %1235 = vmatprep.subr.mxu0 0.0
        %1236 = vmatpush1.msra.mxu0 0.0
        %1237 = vmatprep.subr.mxu0 0.0
        %1238 = vmatpush1.msra.mxu0 0.0
        %1239 = vmatprep.subr.mxu0 0.0
        %1240 = vmatpush1.msra.mxu0 0.0
        %1241 = vmatprep.subr.mxu0 0.0
        %1242 = vmatpush1.msra.mxu0 0.0
        %1243 = vmatprep.subr.mxu0 0.0
        %1244 = vmatpush1.msra.mxu0 0.0
        %1245 = vmatprep.subr.mxu0 0.0
        %1246 = vmatpush1.msra.mxu0 0.0
        %1247 = vmatprep.subr.mxu0 0.0
        %1248 = vmatpush1.msra.mxu0 0.0
        %1249 = vmatprep.subr.mxu0 %v1217
        %1250 = vmatpush1.msra.mxu0 %v1214
        %1251 = vmatprep.subr.mxu0 0.0
        %1252 = vmatpush2.msra.mxu0 0.0
        %1253 = vmatprep.subr.mxu0 0.0
        %1254 = vmatpush2.msra.mxu0 0.0
        %1255 = vmatprep.subr.mxu0 0.0
        %1256 = vmatpush2.msra.mxu0 0.0
        %1257 = vmatprep.subr.mxu0 0.0
        %1258 = vmatpush2.msra.mxu0 0.0
        %1259 = vmatprep.subr.mxu0 0.0
        %1260 = vmatpush2.msra.mxu0 0.0
        %1261 = vmatprep.subr.mxu0 0.0
        %1262 = vmatpush2.msra.mxu0 0.0
        %1263 = vmatprep.subr.mxu0 0.0
        %1264 = vmatpush2.msra.mxu0 0.0
        %1265 = vmatprep.subr.mxu0 0.0
        %1266 = vmatpush2.msra.mxu0 0.0
        %1267 = vmatprep.subr.mxu0 0.0
        %1268 = vmatpush2.msra.mxu0 0.0
        %1269 = vmatprep.subr.mxu0 0.0
        %1270 = vmatpush2.msra.mxu0 0.0
        %1271 = vmatprep.subr.mxu0 0.0
        %1272 = vmatpush2.msra.mxu0 0.0
        %1273 = vmatprep.subr.mxu0 0.0
        %1274 = vmatpush2.msra.mxu0 0.0
        %1275 = vmatprep.subr.mxu0 0.0
        %1276 = vmatpush2.msra.mxu0 0.0
        %1277 = vmatprep.subr.mxu0 0.0
        %1278 = vmatpush2.msra.mxu0 0.0
        %1279 = vmatprep.subr.mxu0 0.0
        %1280 = vmatpush2.msra.mxu0 0.0
        %1281 = vmatprep.subr.mxu0 0.0
        %1282 = vmatpush2.msra.mxu0 0.0
        %1283 = vmatprep.mubr.f32.mxu0 0.0
        %1284 = vmatmul.mubr.f32.gmra.mxu0 %v1211
        %v1285 = vpop.f32.mrf.mxu0
        %v1286 = vadd.f32 %v367, %v1285
        %v1287 = vpop.f32.mrf.mxu0
        %v1288 = vadd.f32 %v369, %v1287
        %1289 = vdwg.mxu0
        %v1290 = vld [vmem:[%s5] sm:$0xf]
        %1292 = vset.pattern.permute.xlu0 0
        %1293 = vperm.xlu0 %1292, %v1290
        %v1294 = vpop.permute.xlu0 %1293
        %v1296 = vadd.f32 %v1286, %v1294
        %v1297 = vadd.f32 %v1288, %v1294
        %v1298 = vld [vmem:[%s6] sm:$0xf]
        %vm1299 = vcmp.ge.f32.partialorder %v1296, 0.0
        %vm1300 = vcmp.ge.f32.partialorder %v1297, 0.0
        %1302 = vset.pattern.permute.xlu0 0
        %1303 = vperm.xlu0 %1302, %v1298
        %v1304 = vpop.permute.xlu0 %1303
        %v1306 = vmul.f32 %v1304, %v1296
        %v1307 = vmul.f32 %v1304, %v1297
        %v1308 = vsel %vm1299, %v1296, %v1306
        %v1309 = vsel %vm1300, %v1297, %v1307
        %v1312 = vcombine.low %v1308, %v1309
        %1314 = vst [vmem:[%s271] sm:$0xff] %v1312
        %s1315 = sand.u32 %s181, 1
        %s1316 = scalar_lea.sflag [#allocation3], %s1315
        %s1317 = sand.u32 %s181, 1
        %s1318 = smul.addr %s1317, 8
        %s1319 = scalar_lea.vmem [#allocation2], %s1318
        // Predicated region
        $region49: #{tpu_custom_call.1} parent=47 // pred_check
          %p1320 = pneg %p191
        $region50: #{tpu_custom_call.1} parent=47 // pred_check_branch
          %1322 = sbr.rel (%p1320) target = $region52
        $region51: #{tpu_custom_call.1} parent=47 // pred_region
          %s1324 = ssub.s32 128, 128
          %1325 = vsyncadd %s1316, %s1324
          %s1326 = smul.addr %s21, 2
          %s1327 = smul.addr %s1326, 64
          %s1328 = scalar_lea.hbm %s7, %s1327
          %s1330 = sshll.u32 %s1319, 4
          %s1331 = int_to_ptr.vmem [resolvable:$true] %s1330
          %1333 = dma.vmem_to_hbm [thread:$0]  %s1331, 128, %s1328, %s1316
        $region52: #{tpu_custom_call.1} parent=47 // pred_fallthru
          _
      $region48: #{tpu_custom_call.1} parent=5 // pred_fallthru
        _
      %p1334 = scmp.le.s32.totalorder 2, %s16
      // Predicated region
      $region53: #{tpu_custom_call.1} parent=5 // pred_check
        %p1335 = pneg %p1334
      $region54: #{tpu_custom_call.1} parent=5 // pred_check_branch
        %1337 = sbr.rel (%p1335) target = $region56
      $region55: #{tpu_custom_call.1} parent=5 // pred_region
        %s1338 = ssub.s32 %s16, 2
        // Predicated region
        $region57: #{tpu_custom_call.1} parent=55 // pred_check
          %p1339 = pneg %p197
        $region58: #{tpu_custom_call.1} parent=55 // pred_check_branch
          %1341 = sbr.rel (%p1339) target = $region60
        $region59: #{tpu_custom_call.1} parent=55 // pred_region
          %s1342 = sand.u32 %s182, 1
          %s1343 = scalar_lea.sflag [#allocation3], %s1342
          %s1344 = sand.u32 %s182, 1
          %s1345 = smul.addr %s1344, 8
          %s1346 = scalar_lea.vmem [#allocation2], %s1345
          %1347 = dma.done %s1343, 128
        $region60: #{tpu_custom_call.1} parent=55 // pred_fallthru
          _
      $region56: #{tpu_custom_call.1} parent=5 // pred_fallthru
        _
    $region6: #{tpu_custom_call.1} parent=1 // loop_footer
      %s20 = sadd.s32 1, %s16
    $region7: #{tpu_custom_call.1} parent=1 // loop_footer_branch
      %15 = sbr.rel target = $region3
    $region8: #{tpu_custom_call.1} parent=1 // loop_exit
      _
    %1348 = vsyncpa [#allocation3], 1
    %s1349 = scalar_lea.sflag [#allocation3], 1
    %1350 = vsyncpa %s1349, 1

</llo_original>
